<compile_context>
chip_gen: v7x
topology: tpu7x:2x2x1
jax: 0.10.0
libtpu: 0.0.40
codegen_flags: <defaults>
</compile_context>

<pallas_src>
import functools

import jax
import jax.numpy as jnp
from jax import lax
from jax.experimental import pallas as pl
from jax.experimental.pallas import tpu as pltpu


def _resdensenet_kernel(x_ref, w0_ref, b0_ref, wl_ref, bl_ref, alpha_ref,
                        wlast_ref, blast_ref, o_ref, y_ref, *, depth):
    # In-kernel f32 -> bf16 cast of the activation tile (rides a VPU slot;
    # avoids the wrapper-side cast's extra HBM read+write).
    x_bf16 = x_ref[...].astype(jnp.bfloat16)
    y0 = jnp.dot(x_bf16, w0_ref[...], preferred_element_type=jnp.float32)
    # y lives in VMEM scratch so vreg live ranges are bounded per layer.
    y_ref[...] = jnp.maximum(y0 + b0_ref[...], 0.0)      # (block_b, width) f32

    def layer(d):
        y = y_ref[...]
        z = jnp.dot(y.astype(jnp.bfloat16), wl_ref[d],
                    preferred_element_type=jnp.float32)
        z = z + bl_ref[pl.ds(d, 1), :]                    # (block_b, w) + (1, w)
        # TODO(synk): nn.Dropout is identity in eval mode; training-mode
        # dropout (inverted mask via pltpu.prng_random_bits) is not implemented.
        y_ref[...] = jnp.maximum(y + alpha_ref[d] * z, 0.0)

    if depth <= 8:
        # Small depth: static unroll is fine (per review).
        for d in range(depth):
            layer(d)
    else:
        # Large depth: keep per-iteration liveness bounded and code size small.
        def body(d, carry):
            layer(d)
            return carry
        lax.fori_loop(0, depth, body, 0, unroll=False)

    # Final (width -> 1) projection as elementwise multiply + lane reduction
    # (an N=1 matmul would use 1/256 of the MXU output lanes).  Transpose the
    # (block_b, 1) column to a lane-dense (1, block_b) row (one XLU op).
    y = y_ref[...]
    out_col = jnp.sum(y * wlast_ref[...], axis=-1, keepdims=True) + blast_ref[0]
    o_ref[...] = jnp.transpose(out_col)                   # (1, block_b)


def _num_tensorcores_per_chip():
    try:
        kind = jax.devices()[0].device_kind.lower()
        if "v7" in kind or "7x" in kind:
            return 2
    except Exception:
        pass
    return 1


def _vmem_limit_bytes():
    """~75% of physical VMEM: headroom for double-buffers / compiler scratch."""
    try:
        cap = pltpu.get_tpu_info().vmem_capacity_bytes
    except Exception:
        cap = 128 * 1024 * 1024
    return int(cap) * 3 // 4


def _pick_block_b(batch, n_tc):
    """Generation-aware batch tiling.

    Single-TC (v5e/v6e): extra grid steps buy no parallelism and pay ~0.35 us
    each, so use one big tile when the batch is small.  v7x (2 TCs): keep >= 2
    grid steps with an even count so neither core idles.
    """
    if n_tc <= 1:
        if batch <= 1024:
            return batch
        for cand in (1024, 512, 256, 128):
            if batch % cand == 0:
                return cand
        return batch
    for cand in (512, 256, 128):
        if batch % cand == 0 and (batch // cand) % 2 == 0:
            return cand
    for cand in (512, 256, 128, 64, 32, 16, 8):
        if batch % cand == 0 and batch // cand >= 2:
            return cand
    return batch


def _const_spec(shape):
    """BlockSpec for a parameter resident across all grid steps.

    Single-buffered: a constant index_map never re-fetches, so the default
    second pipeline buffer is pure wasted VMEM (matters most on v7x's 64 MiB).
    """
    zeros = (0,) * len(shape)
    index_map = lambda i: zeros
    try:
        return pl.BlockSpec(shape, index_map, pipeline_mode=pl.Buffered(1))
    except (TypeError, AttributeError):
        return pl.BlockSpec(shape, index_map)


@functools.partial(jax.jit, static_argnames=("depth", "block_b"))
def resdensenet_forward(x, kparams, *, depth, block_b=None):
    """x: (B, input_size) f32.  kparams: prepare_kernel_params(init_params(...))."""
    B, input_size = x.shape
    width = kparams["w0"].shape[1]
    if block_b is None:
        block_b = _pick_block_b(B, _num_tensorcores_per_chip())
    assert B % block_b == 0
    grid = (B // block_b,)

    # TODO(synk): for very large models (depth*width*width bf16 > ~VMEM/2) the
    # resident-weights design should switch to per-layer weight streaming
    # (depth as an 'arbitrary' grid axis or manual make_async_copy double
    # buffering); not needed at these sizes.

    kernel = functools.partial(_resdensenet_kernel, depth=depth)
    smem_spec = pl.BlockSpec(memory_space=pltpu.MemorySpace.SMEM)

    flops = 2 * B * width * (input_size + depth * width) + 2 * B * width
    bytes_accessed = (
        x.size * 4                              # activations (f32 in)
        + kparams["w0"].size * 2 + kparams["wl"].size * 2    # bf16 weights
        + (kparams["b0"].size + kparams["bl"].size + kparams["wlast"].size
           + kparams["alpha"].size + kparams["blast"].size) * 4
        + B * 4)                                # output

    out_row = pl.pallas_call(
        kernel,
        out_shape=jax.ShapeDtypeStruct((1, B), jnp.float32),   # lane-dense slab
        grid_spec=pltpu.PrefetchScalarGridSpec(
            num_scalar_prefetch=0,
            grid=grid,
            in_specs=[
                # activations: f32, tiled and pipelined over batch
                pl.BlockSpec((block_b, input_size), lambda i: (i, 0)),
                # parameters: resident across all grid steps, single-buffered
                _const_spec((input_size, width)),       # w0  (bf16)
                _const_spec((1, width)),                # b0  (f32)
                _const_spec((depth, width, width)),     # stacked layer W (bf16)
                _const_spec((depth, width)),            # stacked layer b (f32)
                smem_spec,                              # alpha  (depth,) SMEM
                _const_spec((1, width)),                # wlast row (f32)
                smem_spec,                              # blast  (1,)    SMEM
            ],
            out_specs=pl.BlockSpec((1, block_b), lambda i: (0, i)),
            scratch_shapes=[pltpu.VMEM((block_b, width), jnp.float32)],
        ),
        compiler_params=pltpu.CompilerParams(
            dimension_semantics=("parallel",),
            vmem_limit_bytes=_vmem_limit_bytes()),
        cost_estimate=pl.CostEstimate(flops=flops, transcendentals=0,
                                      bytes_accessed=bytes_accessed),
    )(x, kparams["w0"], kparams["b0"], kparams["wl"], kparams["bl"],
      kparams["alpha"], kparams["wlast"], kparams["blast"])
    return out_row.reshape(B, 1)


def init_params(key, input_size, width, depth):
    """Deterministic synthetic init matching the PyTorch module's shapes.

    PyTorch Linear weight is (out, in); we store the transposed (in, out).
    nn.Parameter(torch.zeros(1)) alphas would zero the residual branch, so we
    use small deterministic values instead to exercise the full compute path.
    """
    ks = jax.random.split(key, 5)
    w0 = jax.random.normal(ks[0], (input_size, width), jnp.float32) * 0.1
    b0 = jax.random.normal(ks[1], (1, width), jnp.float32) * 0.1
    wl = jax.random.normal(ks[2], (depth, width, width), jnp.float32) * 0.1
    bl = jax.random.normal(ks[3], (depth, width), jnp.float32) * 0.1
    alpha = 0.1 * jnp.arange(1, depth + 1, dtype=jnp.float32)
    wlast = jax.random.normal(ks[4], (width, 1), jnp.float32) * 0.1
    blast = jnp.array([0.05], dtype=jnp.float32)
    return dict(w0=w0, b0=b0, wl=wl, bl=bl, alpha=alpha, wlast=wlast, blast=blast)


def prepare_kernel_params(params):
    """One-time (outside jit) conversion to the kernel's dtypes / layouts.

    bf16 matmul operands (MXU fast path, halves weight VMEM/HBM footprint);
    biases / alphas / residual math stay f32 (v5e VPU has no bf16).
    """
    depth, width = params["wl"].shape[0], params["wl"].shape[2]
    return dict(
        w0=params["w0"].astype(jnp.bfloat16),
        b0=params["b0"].reshape(1, width).astype(jnp.float32),
        wl=params["wl"].astype(jnp.bfloat16),
        bl=params["bl"].reshape(depth, width).astype(jnp.float32),
        alpha=params["alpha"].reshape(depth).astype(jnp.float32),
        wlast=params["wlast"].reshape(1, width).astype(jnp.float32),
        blast=params["blast"].reshape(1).astype(jnp.float32),
    )


def reference_forward(x, params, depth):
    """Pure-JAX f32 reference with the module's semantics (eval mode)."""
    y = jnp.maximum(x @ params["w0"] + params["b0"], 0.0)
    for d in range(depth):
        z = y @ params["wl"][d] + params["bl"][d]
        y = jnp.maximum(y + params["alpha"][d] * z, 0.0)
    return y @ params["wlast"] + params["blast"]


if __name__ == "__main__":
    B, INPUT_SIZE, WIDTH, DEPTH = 256, 64, 128, 3

    key = jax.random.PRNGKey(0)
    kx, kp = jax.random.split(key)
    x = jax.random.normal(kx, (B, INPUT_SIZE), jnp.float32)
    params = init_params(kp, INPUT_SIZE, WIDTH, DEPTH)
    kparams = prepare_kernel_params(params)   # one-time cast, outside jit

    out = resdensenet_forward(x, kparams, depth=DEPTH)
    out = jax.block_until_ready(out)

    ref = reference_forward(x, params, DEPTH)
    assert out.shape == (B, 1)
    # bf16 matmul operands with f32 accumulation → looser than the f32 1e-5.
    assert jnp.allclose(out, ref, atol=3e-2, rtol=3e-2), "mismatch vs reference"

    print("KERNEL_OK")
</pallas_src>

<mosaic_0001>
module attributes {stable_mosaic.version = 11 : i64} {
  func.func @_resdensenet_kernel(%arg0: i32, %arg1: memref<256x64xf32, #tpu.memory_space<vmem>>, %arg2: memref<64x128xbf16, #tpu.memory_space<vmem>>, %arg3: memref<1x128xf32, #tpu.memory_space<vmem>>, %arg4: memref<3x128x128xbf16, #tpu.memory_space<vmem>>, %arg5: memref<3x128xf32, #tpu.memory_space<vmem>>, %arg6: memref<3xf32, #tpu.memory_space<smem>>, %arg7: memref<1x128xf32, #tpu.memory_space<vmem>>, %arg8: memref<1xf32, #tpu.memory_space<smem>>, %arg9: memref<1x256xf32, #tpu.memory_space<vmem>>, %arg10: memref<256x128xf32, #tpu.memory_space<vmem>>) attributes {dimension_semantics = [#tpu.dimension_semantics<parallel>], iteration_bounds = array<i64: 1>, scalar_prefetch = 0 : i64, scratch_operands = 1 : i64, tpu.core_type = #tpu.core_type<tc>, window_params = [{transform_indices = @transform_0, window_bounds = array<i64: 256, 64>}, {pipeline_mode = #tpu.pipeline_mode<synchronous>, transform_indices = @transform_1, window_bounds = array<i64: 64, 128>}, {pipeline_mode = #tpu.pipeline_mode<synchronous>, transform_indices = @transform_2, window_bounds = array<i64: 1, 128>}, {pipeline_mode = #tpu.pipeline_mode<synchronous>, transform_indices = @transform_3, window_bounds = array<i64: 3, 128, 128>}, {pipeline_mode = #tpu.pipeline_mode<synchronous>, transform_indices = @transform_4, window_bounds = array<i64: 3, 128>}, {transform_indices = @transform_5, window_bounds = array<i64: 3>}, {pipeline_mode = #tpu.pipeline_mode<synchronous>, transform_indices = @transform_6, window_bounds = array<i64: 1, 128>}, {transform_indices = @transform_7, window_bounds = array<i64: 1>}, {transform_indices = @transform_8, window_bounds = array<i64: 1, 256>}]} {
    %c0 = arith.constant 0 : index
    %c0_0 = arith.constant 0 : index
    %0 = vector.load %arg1[%c0, %c0_0] : memref<256x64xf32, #tpu.memory_space<vmem>>, vector<256x64xf32>
    %1 = arith.truncf %0 : vector<256x64xf32> to vector<256x64xbf16>
    %c0_1 = arith.constant 0 : index
    %c0_2 = arith.constant 0 : index
    %2 = vector.load %arg2[%c0_1, %c0_2] : memref<64x128xbf16, #tpu.memory_space<vmem>>, vector<64x128xbf16>
    %cst = arith.constant dense<0.000000e+00> : vector<256x128xf32>
    %3 = tpu.matmul %1, %2, %cst {dimension_numbers = #tpu.dot_dimension_numbers<[1], [0], [0], [1], [0, 0, 1, 1], [], []>} : vector<256x64xbf16>, vector<64x128xbf16>, vector<256x128xf32> -> vector<256x128xf32>
    %c0_3 = arith.constant 0 : index
    %c0_4 = arith.constant 0 : index
    %4 = vector.load %arg3[%c0_3, %c0_4] : memref<1x128xf32, #tpu.memory_space<vmem>>, vector<1x128xf32>
    %5 = vector.broadcast %4 : vector<1x128xf32> to vector<256x128xf32>
    %6 = arith.addf %3, %5 : vector<256x128xf32>
    %cst_5 = arith.constant 0.000000e+00 : f32
    %7 = vector.broadcast %cst_5 : f32 to vector<256x128xf32>
    %8 = arith.maximumf %6, %7 : vector<256x128xf32>
    %c0_6 = arith.constant 0 : index
    %c0_7 = arith.constant 0 : index
    %9 = vector.load %arg10[%c0_6, %c0_7] : memref<256x128xf32, #tpu.memory_space<vmem>>, vector<256x128xf32>
    tpu.vector_store %arg10[%c0_6, %c0_7], %8 {strides = array<i32>} : memref<256x128xf32, #tpu.memory_space<vmem>>, vector<256x128xf32>,
    %c0_8 = arith.constant 0 : index
    %c0_9 = arith.constant 0 : index
    %10 = vector.load %arg10[%c0_8, %c0_9] : memref<256x128xf32, #tpu.memory_space<vmem>>, vector<256x128xf32>
    %11 = arith.truncf %10 : vector<256x128xf32> to vector<256x128xbf16>
    %c0_10 = arith.constant 0 : index
    %c0_11 = arith.constant 0 : index
    %c0_12 = arith.constant 0 : index
    %12 = vector.load %arg4[%c0_10, %c0_11, %c0_12] : memref<3x128x128xbf16, #tpu.memory_space<vmem>>, vector<1x128x128xbf16>
    %13 = vector.shape_cast %12 : vector<1x128x128xbf16> to vector<128x128xbf16>
    %cst_13 = arith.constant dense<0.000000e+00> : vector<256x128xf32>
    %14 = tpu.matmul %11, %13, %cst_13 {dimension_numbers = #tpu.dot_dimension_numbers<[1], [0], [0], [1], [0, 0, 1, 1], [], []>} : vector<256x128xbf16>, vector<128x128xbf16>, vector<256x128xf32> -> vector<256x128xf32>
    %c0_14 = arith.constant 0 : index
    %c0_15 = arith.constant 0 : index
    %15 = vector.load %arg5[%c0_14, %c0_15] : memref<3x128xf32, #tpu.memory_space<vmem>>, vector<1x128xf32>
    %16 = vector.broadcast %15 : vector<1x128xf32> to vector<256x128xf32>
    %17 = arith.addf %14, %16 : vector<256x128xf32>
    %c0_16 = arith.constant 0 : index
    %18 = memref.load %arg6[%c0_16] : memref<3xf32, #tpu.memory_space<smem>>
    %19 = vector.broadcast %18 : f32 to vector<256x128xf32>
    %20 = arith.mulf %19, %17 : vector<256x128xf32>
    %21 = arith.addf %10, %20 : vector<256x128xf32>
    %cst_17 = arith.constant 0.000000e+00 : f32
    %22 = vector.broadcast %cst_17 : f32 to vector<256x128xf32>
    %23 = arith.maximumf %21, %22 : vector<256x128xf32>
    %c0_18 = arith.constant 0 : index
    %c0_19 = arith.constant 0 : index
    %24 = vector.load %arg10[%c0_18, %c0_19] : memref<256x128xf32, #tpu.memory_space<vmem>>, vector<256x128xf32>
    tpu.vector_store %arg10[%c0_18, %c0_19], %23 {strides = array<i32>} : memref<256x128xf32, #tpu.memory_space<vmem>>, vector<256x128xf32>,
    %c0_20 = arith.constant 0 : index
    %c0_21 = arith.constant 0 : index
    %25 = vector.load %arg10[%c0_20, %c0_21] : memref<256x128xf32, #tpu.memory_space<vmem>>, vector<256x128xf32>
    %26 = arith.truncf %25 : vector<256x128xf32> to vector<256x128xbf16>
    %c1 = arith.constant 1 : index
    %c0_22 = arith.constant 0 : index
    %c0_23 = arith.constant 0 : index
    %27 = vector.load %arg4[%c1, %c0_22, %c0_23] : memref<3x128x128xbf16, #tpu.memory_space<vmem>>, vector<1x128x128xbf16>
    %28 = vector.shape_cast %27 : vector<1x128x128xbf16> to vector<128x128xbf16>
    %cst_24 = arith.constant dense<0.000000e+00> : vector<256x128xf32>
    %29 = tpu.matmul %26, %28, %cst_24 {dimension_numbers = #tpu.dot_dimension_numbers<[1], [0], [0], [1], [0, 0, 1, 1], [], []>} : vector<256x128xbf16>, vector<128x128xbf16>, vector<256x128xf32> -> vector<256x128xf32>
    %c1_25 = arith.constant 1 : index
    %c0_26 = arith.constant 0 : index
    %30 = vector.load %arg5[%c1_25, %c0_26] : memref<3x128xf32, #tpu.memory_space<vmem>>, vector<1x128xf32>
    %31 = vector.broadcast %30 : vector<1x128xf32> to vector<256x128xf32>
    %32 = arith.addf %29, %31 : vector<256x128xf32>
    %c1_27 = arith.constant 1 : index
    %33 = memref.load %arg6[%c1_27] : memref<3xf32, #tpu.memory_space<smem>>
    %34 = vector.broadcast %33 : f32 to vector<256x128xf32>
    %35 = arith.mulf %34, %32 : vector<256x128xf32>
    %36 = arith.addf %25, %35 : vector<256x128xf32>
    %cst_28 = arith.constant 0.000000e+00 : f32
    %37 = vector.broadcast %cst_28 : f32 to vector<256x128xf32>
    %38 = arith.maximumf %36, %37 : vector<256x128xf32>
    %c0_29 = arith.constant 0 : index
    %c0_30 = arith.constant 0 : index
    %39 = vector.load %arg10[%c0_29, %c0_30] : memref<256x128xf32, #tpu.memory_space<vmem>>, vector<256x128xf32>
    tpu.vector_store %arg10[%c0_29, %c0_30], %38 {strides = array<i32>} : memref<256x128xf32, #tpu.memory_space<vmem>>, vector<256x128xf32>,
    %c0_31 = arith.constant 0 : index
    %c0_32 = arith.constant 0 : index
    %40 = vector.load %arg10[%c0_31, %c0_32] : memref<256x128xf32, #tpu.memory_space<vmem>>, vector<256x128xf32>
    %41 = arith.truncf %40 : vector<256x128xf32> to vector<256x128xbf16>
    %c2 = arith.constant 2 : index
    %c0_33 = arith.constant 0 : index
    %c0_34 = arith.constant 0 : index
    %42 = vector.load %arg4[%c2, %c0_33, %c0_34] : memref<3x128x128xbf16, #tpu.memory_space<vmem>>, vector<1x128x128xbf16>
    %43 = vector.shape_cast %42 : vector<1x128x128xbf16> to vector<128x128xbf16>
    %cst_35 = arith.constant dense<0.000000e+00> : vector<256x128xf32>
    %44 = tpu.matmul %41, %43, %cst_35 {dimension_numbers = #tpu.dot_dimension_numbers<[1], [0], [0], [1], [0, 0, 1, 1], [], []>} : vector<256x128xbf16>, vector<128x128xbf16>, vector<256x128xf32> -> vector<256x128xf32>
    %c2_36 = arith.constant 2 : index
    %c0_37 = arith.constant 0 : index
    %45 = vector.load %arg5[%c2_36, %c0_37] : memref<3x128xf32, #tpu.memory_space<vmem>>, vector<1x128xf32>
    %46 = vector.broadcast %45 : vector<1x128xf32> to vector<256x128xf32>
    %47 = arith.addf %44, %46 : vector<256x128xf32>
    %c2_38 = arith.constant 2 : index
    %48 = memref.load %arg6[%c2_38] : memref<3xf32, #tpu.memory_space<smem>>
    %49 = vector.broadcast %48 : f32 to vector<256x128xf32>
    %50 = arith.mulf %49, %47 : vector<256x128xf32>
    %51 = arith.addf %40, %50 : vector<256x128xf32>
    %cst_39 = arith.constant 0.000000e+00 : f32
    %52 = vector.broadcast %cst_39 : f32 to vector<256x128xf32>
    %53 = arith.maximumf %51, %52 : vector<256x128xf32>
    %c0_40 = arith.constant 0 : index
    %c0_41 = arith.constant 0 : index
    %54 = vector.load %arg10[%c0_40, %c0_41] : memref<256x128xf32, #tpu.memory_space<vmem>>, vector<256x128xf32>
    tpu.vector_store %arg10[%c0_40, %c0_41], %53 {strides = array<i32>} : memref<256x128xf32, #tpu.memory_space<vmem>>, vector<256x128xf32>,
    %c0_42 = arith.constant 0 : index
    %c0_43 = arith.constant 0 : index
    %55 = vector.load %arg10[%c0_42, %c0_43] : memref<256x128xf32, #tpu.memory_space<vmem>>, vector<256x128xf32>
    %c0_44 = arith.constant 0 : index
    %c0_45 = arith.constant 0 : index
    %56 = vector.load %arg7[%c0_44, %c0_45] : memref<1x128xf32, #tpu.memory_space<vmem>>, vector<1x128xf32>
    %57 = vector.broadcast %56 : vector<1x128xf32> to vector<256x128xf32>
    %58 = arith.mulf %55, %57 : vector<256x128xf32>
    %cst_46 = arith.constant dense<0.000000e+00> : vector<256xf32>
    %59 = vector.multi_reduction <add>, %58, %cst_46 [1] : vector<256x128xf32> to vector<256xf32>
    %60 = vector.shape_cast %59 : vector<256xf32> to vector<256x1xf32>
    %c0_47 = arith.constant 0 : index
    %61 = memref.load %arg8[%c0_47] : memref<1xf32, #tpu.memory_space<smem>>
    %62 = vector.broadcast %61 : f32 to vector<256x1xf32>
    %63 = arith.addf %60, %62 : vector<256x1xf32>
    %64 = tpu.transpose %63, [1, 0] : vector<256x1xf32> -> vector<1x256xf32>
    %c0_48 = arith.constant 0 : index
    %c0_49 = arith.constant 0 : index
    %65 = vector.load %arg9[%c0_48, %c0_49] : memref<1x256xf32, #tpu.memory_space<vmem>>, vector<1x256xf32>
    tpu.vector_store %arg9[%c0_48, %c0_49], %64 {strides = array<i32>} : memref<1x256xf32, #tpu.memory_space<vmem>>, vector<1x256xf32>,
    return
  }
  func.func @transform_0(%arg0: i32) -> (i32, i32) {
    %c0_i32 = arith.constant 0 : i32
    %c0_i32_0 = arith.constant 0 : i32
    return %arg0, %c0_i32 : i32, i32
  }
  func.func @transform_1(%arg0: i32) -> (i32, i32) {
    %c0_i32 = arith.constant 0 : i32
    %c0_i32_0 = arith.constant 0 : i32
    %c0_i32_1 = arith.constant 0 : i32
    return %c0_i32, %c0_i32_0 : i32, i32
  }
  func.func @transform_2(%arg0: i32) -> (i32, i32) {
    %c0_i32 = arith.constant 0 : i32
    %c0_i32_0 = arith.constant 0 : i32
    %c0_i32_1 = arith.constant 0 : i32
    return %c0_i32, %c0_i32_0 : i32, i32
  }
  func.func @transform_3(%arg0: i32) -> (i32, i32, i32) {
    %c0_i32 = arith.constant 0 : i32
    %c0_i32_0 = arith.constant 0 : i32
    %c0_i32_1 = arith.constant 0 : i32
    %c0_i32_2 = arith.constant 0 : i32
    return %c0_i32, %c0_i32_0, %c0_i32_1 : i32, i32, i32
  }
  func.func @transform_4(%arg0: i32) -> (i32, i32) {
    %c0_i32 = arith.constant 0 : i32
    %c0_i32_0 = arith.constant 0 : i32
    %c0_i32_1 = arith.constant 0 : i32
    return %c0_i32, %c0_i32_0 : i32, i32
  }
  func.func @transform_5(%arg0: i32) -> i32 {
    %c0_i32 = arith.constant 0 : i32
    %c0_i32_0 = arith.constant 0 : i32
    return %c0_i32 : i32
  }
  func.func @transform_6(%arg0: i32) -> (i32, i32) {
    %c0_i32 = arith.constant 0 : i32
    %c0_i32_0 = arith.constant 0 : i32
    %c0_i32_1 = arith.constant 0 : i32
    return %c0_i32, %c0_i32_0 : i32, i32
  }
  func.func @transform_7(%arg0: i32) -> i32 {
    %c0_i32 = arith.constant 0 : i32
    %c0_i32_0 = arith.constant 0 : i32
    return %c0_i32 : i32
  }
  func.func @transform_8(%arg0: i32) -> (i32, i32) {
    %c0_i32 = arith.constant 0 : i32
    %c0_i32_0 = arith.constant 0 : i32
    return %c0_i32, %arg0 : i32, i32
  }
}

</mosaic_0001>

<llo_original>
// kernel: resdensenet_forward.1
$region0: #{resdensenet_forward.1}
  #allocation0 [shape = 'u32[]', space=smem, size = 0x4, offset = 0x4, fixed_abs, tag = 'smem constant byte address 0x4 - core index']
  #allocation1 [shape = 'u32[144,128]{1,0:T(1,128)}', space=vmem, size = 0x12000, scoped, tag = 'internal scratch']
  #allocation2 [shape = 'f32[256,128]{1,0:T(8,128)}', space=vmem, size = 0x20000, scoped, tag = 'scratch operand']
  #allocation3 [shape = 'f32[1]{0:T(128)S(6)}', space=smem, size = 0x200, scoped, tag = 'scoped memory for resdensenet_forward.1']
  %s0 = inlined_call_operand.hbm [shape: f32[256,64], index: 0, kind: input, shape index: {}]
  %s1 = inlined_call_operand.hbm [shape: bf16[64,128], index: 1, kind: input, shape index: {}]
  %s2 = inlined_call_operand.hbm [shape: f32[1,128], index: 2, kind: input, shape index: {}]
  %s3 = inlined_call_operand.hbm [shape: bf16[3,128,128], index: 3, kind: input, shape index: {}]
  %s4 = inlined_call_operand.hbm [shape: f32[3,128], index: 4, kind: input, shape index: {}]
  %s5 = inlined_call_operand.hbm [shape: f32[3], index: 5, kind: input, shape index: {}]
  %s6 = inlined_call_operand.hbm [shape: f32[1,128], index: 6, kind: input, shape index: {}]
  %s7 = inlined_call_operand.<no memory space> [shape: f32[1], index: 7, kind: input, shape index: {}]
  %s8 = inlined_call_operand.hbm [shape: f32[1,256], index: 8, kind: output, shape index: {}]
  %s9 = sld [smem:[#allocation0]]
  $region70: #{resdensenet_forward.1} parent=0
    _
  %s11 = ssub.s32 1, %s9
  %s12 = scalar_select 0, %s11, %s9
  %13 = sst [smem:[#allocation3]] %s7
  $region1: #{resdensenet_forward.1} parent=0
    #allocation4 [shape = 'u8[131072]{0}', space=vmem, size = 0x20000, scoped, tag = 'input window, operand 0, single buffered']
    #allocation5 [shape = 's32[1]{0}', space=sflag, size = 0x4, scoped, tag = 'scoped memory for resdensenet_forward.1']
    #allocation6 [shape = 's32[1]{0}', space=sflag, size = 0x4, scoped, tag = 'scoped memory for resdensenet_forward.1']
    #allocation7 [shape = 's32[1]{0}', space=sflag, size = 0x4, scoped, tag = 'scoped memory for resdensenet_forward.1']
    #allocation8 [shape = 'u8[16384]{0}', space=vmem, size = 0x4000, scoped, tag = 'input window, operand 1, single buffered']
    #allocation9 [shape = 's32[1]{0}', space=sflag, size = 0x4, scoped, tag = 'scoped memory for resdensenet_forward.1']
    #allocation10 [shape = 'u8[512]{0}', space=vmem, size = 0x400, scoped, tag = 'input window, operand 2, single buffered']
    #allocation11 [shape = 'u8[98304]{0}', space=vmem, size = 0x18000, scoped, tag = 'input window, operand 3, single buffered']
    #allocation12 [shape = 's32[1]{0}', space=sflag, size = 0x4, scoped, tag = 'scoped memory for resdensenet_forward.1']
    #allocation13 [shape = 'u8[2048]{0}', space=vmem, size = 0x800, scoped, tag = 'input window, operand 4, single buffered']
    #allocation14 [shape = 'u8[512]{0}', space=smem, size = 0x200, scoped, tag = 'input window, operand 5, single buffered']
    #allocation15 [shape = 'u8[512]{0}', space=vmem, size = 0x400, scoped, tag = 'input window, operand 6, single buffered']
    #allocation16 [shape = 's32[1]{0}', space=sflag, size = 0x4, scoped, tag = 'scoped memory for resdensenet_forward.1']
    #allocation17 [shape = 'u8[1024]{0}', space=vmem, size = 0x400, scoped, tag = 'output window, operand 0, single buffered']
    %14 = vsyncpa [#allocation5], 0
    %15 = vsyncpa [#allocation9], 0
    %16 = vsyncpa [#allocation12], 0
    %17 = vsyncpa [#allocation7], 0
    %18 = vsyncpa [#allocation16], 0
    %19 = vsyncpa [#allocation6], 0
    // Predicated region
    $region2: #{resdensenet_forward.1} parent=1 // pred_check
      _
    $region3: #{resdensenet_forward.1} parent=1 // pred_check_branch
      %21 = sbr.rel (0) target = $region5
    $region4: #{resdensenet_forward.1} parent=1 // pred_region
      %s23 = ssub.s32 4096, 4096
      %24 = vsyncadd [#allocation5], %s23
      %s25 = sshll.u32 [#allocation4], 4
      %s26 = int_to_ptr.vmem [resolvable:$true] %s25
      %31 = dma.hbm_to_vmem [thread:$0]  %s0, 4096, %s26, [#allocation5], 128, 128, 8
    $region5: #{resdensenet_forward.1} parent=1 // pred_fallthru
      _
    // Predicated region
    $region6: #{resdensenet_forward.1} parent=1 // pred_check
      _
    $region7: #{resdensenet_forward.1} parent=1 // pred_check_branch
      %33 = sbr.rel (0) target = $region9
    $region8: #{resdensenet_forward.1} parent=1 // pred_region
      %s35 = ssub.s32 512, 512
      %36 = vsyncadd [#allocation9], %s35
      %s37 = sshll.u32 [#allocation8], 4
      %s38 = int_to_ptr.vmem [resolvable:$true] %s37
      %43 = dma.hbm_to_vmem [thread:$0]  %s1, 512, %s38, [#allocation9], 64, 64, 4
    $region9: #{resdensenet_forward.1} parent=1 // pred_fallthru
      _
    // Predicated region
    $region10: #{resdensenet_forward.1} parent=1 // pred_check
      _
    $region11: #{resdensenet_forward.1} parent=1 // pred_check_branch
      %45 = sbr.rel (0) target = $region13
    $region12: #{resdensenet_forward.1} parent=1 // pred_region
      %s47 = ssub.s32 16, 16
      %48 = vsyncadd [#allocation9], %s47
      %s50 = sshll.u32 [#allocation10], 4
      %s51 = int_to_ptr.vmem [resolvable:$true] %s50
      %53 = dma.hbm_to_vmem [thread:$0]  %s2, 16, %s51, [#allocation9]
    $region13: #{resdensenet_forward.1} parent=1 // pred_fallthru
      _
    // Predicated region
    $region14: #{resdensenet_forward.1} parent=1 // pred_check
      _
    $region15: #{resdensenet_forward.1} parent=1 // pred_check_branch
      %55 = sbr.rel (0) target = $region17
    $region16: #{resdensenet_forward.1} parent=1 // pred_region
      %s57 = ssub.s32 3072, 3072
      %58 = vsyncadd [#allocation12], %s57
      %s59 = sshll.u32 [#allocation11], 4
      %s60 = int_to_ptr.vmem [resolvable:$true] %s59
      %65 = dma.hbm_to_vmem [thread:$0]  %s3, 3072, %s60, [#allocation12], 64, 64, 4
    $region17: #{resdensenet_forward.1} parent=1 // pred_fallthru
      _
    // Predicated region
    $region18: #{resdensenet_forward.1} parent=1 // pred_check
      _
    $region19: #{resdensenet_forward.1} parent=1 // pred_check_branch
      %67 = sbr.rel (0) target = $region21
    $region20: #{resdensenet_forward.1} parent=1 // pred_region
      %s69 = ssub.s32 64, 64
      %70 = vsyncadd [#allocation12], %s69
      %s72 = sshll.u32 [#allocation13], 4
      %s73 = int_to_ptr.vmem [resolvable:$true] %s72
      %75 = dma.hbm_to_vmem [thread:$0]  %s4, 64, %s73, [#allocation12]
    $region21: #{resdensenet_forward.1} parent=1 // pred_fallthru
      _
    // Predicated region
    $region22: #{resdensenet_forward.1} parent=1 // pred_check
      _
    $region23: #{resdensenet_forward.1} parent=1 // pred_check_branch
      %77 = sbr.rel (0) target = $region25
    $region24: #{resdensenet_forward.1} parent=1 // pred_region
      %s79 = ssub.s32 16, 16
      %80 = vsyncadd [#allocation7], %s79
      %83 = dma.hbm_to_smem %s5, 16, [#allocation14], [#allocation7]
    $region25: #{resdensenet_forward.1} parent=1 // pred_fallthru
      _
    // Predicated region
    $region26: #{resdensenet_forward.1} parent=1 // pred_check
      _
    $region27: #{resdensenet_forward.1} parent=1 // pred_check_branch
      %85 = sbr.rel (0) target = $region29
    $region28: #{resdensenet_forward.1} parent=1 // pred_region
      %s87 = ssub.s32 16, 16
      %88 = vsyncadd [#allocation16], %s87
      %s90 = sshll.u32 [#allocation15], 4
      %s91 = int_to_ptr.vmem [resolvable:$true] %s90
      %93 = dma.hbm_to_vmem [thread:$0]  %s6, 16, %s91, [#allocation16]
    $region29: #{resdensenet_forward.1} parent=1 // pred_fallthru
      _
    // Predicated region
    $region30: #{resdensenet_forward.1} parent=1 // pred_check
      _
    $region31: #{resdensenet_forward.1} parent=1 // pred_check_branch
      %95 = sbr.rel (0) target = $region33
    $region32: #{resdensenet_forward.1} parent=1 // pred_region
      _
    $region33: #{resdensenet_forward.1} parent=1 // pred_fallthru
      _
    // Predicated region
    $region34: #{resdensenet_forward.1} parent=1 // pred_check
      _
    $region35: #{resdensenet_forward.1} parent=1 // pred_check_branch
      %97 = sbr.rel (0) target = $region37
    $region36: #{resdensenet_forward.1} parent=1 // pred_region
      %98 = dma.done [#allocation5], 4096
    $region37: #{resdensenet_forward.1} parent=1 // pred_fallthru
      _
    // Predicated region
    $region38: #{resdensenet_forward.1} parent=1 // pred_check
      _
    $region39: #{resdensenet_forward.1} parent=1 // pred_check_branch
      %100 = sbr.rel (0) target = $region41
    $region40: #{resdensenet_forward.1} parent=1 // pred_region
      %101 = dma.done [#allocation9], 512
    $region41: #{resdensenet_forward.1} parent=1 // pred_fallthru
      _
    // Predicated region
    $region42: #{resdensenet_forward.1} parent=1 // pred_check
      _
    $region43: #{resdensenet_forward.1} parent=1 // pred_check_branch
      %103 = sbr.rel (0) target = $region45
    $region44: #{resdensenet_forward.1} parent=1 // pred_region
      %104 = dma.done [#allocation9], 16
    $region45: #{resdensenet_forward.1} parent=1 // pred_fallthru
      _
    // Predicated region
    $region46: #{resdensenet_forward.1} parent=1 // pred_check
      _
    $region47: #{resdensenet_forward.1} parent=1 // pred_check_branch
      %106 = sbr.rel (0) target = $region49
    $region48: #{resdensenet_forward.1} parent=1 // pred_region
      %107 = dma.done [#allocation12], 3072
    $region49: #{resdensenet_forward.1} parent=1 // pred_fallthru
      _
    // Predicated region
    $region50: #{resdensenet_forward.1} parent=1 // pred_check
      _
    $region51: #{resdensenet_forward.1} parent=1 // pred_check_branch
      %109 = sbr.rel (0) target = $region53
    $region52: #{resdensenet_forward.1} parent=1 // pred_region
      %110 = dma.done [#allocation12], 64
    $region53: #{resdensenet_forward.1} parent=1 // pred_fallthru
      _
    // Predicated region
    $region54: #{resdensenet_forward.1} parent=1 // pred_check
      _
    $region55: #{resdensenet_forward.1} parent=1 // pred_check_branch
      %112 = sbr.rel (0) target = $region57
    $region56: #{resdensenet_forward.1} parent=1 // pred_region
      %113 = dma.done [#allocation7], 16
    $region57: #{resdensenet_forward.1} parent=1 // pred_fallthru
      _
    // Predicated region
    $region58: #{resdensenet_forward.1} parent=1 // pred_check
      _
    $region59: #{resdensenet_forward.1} parent=1 // pred_check_branch
      %115 = sbr.rel (0) target = $region61
    $region60: #{resdensenet_forward.1} parent=1 // pred_region
      %116 = dma.done [#allocation16], 16
    $region61: #{resdensenet_forward.1} parent=1 // pred_fallthru
      _
    %117 = sfence
    %v119 = vld [vmem:[#allocation4] sm:$0xff]
    %v120 = vld [vmem:[#allocation4 + $0x8] sm:$0xff]
    %v121 = vld [vmem:[#allocation4 + $0x10] sm:$0xff]
    %v122 = vld [vmem:[#allocation4 + $0x18] sm:$0xff]
    %v123 = vld [vmem:[#allocation4 + $0x20] sm:$0xff]
    %v124 = vld [vmem:[#allocation4 + $0x28] sm:$0xff]
    %v125 = vld [vmem:[#allocation4 + $0x30] sm:$0xff]
    %v126 = vld [vmem:[#allocation4 + $0x38] sm:$0xff]
    %v127 = vld [vmem:[#allocation4 + $0x40] sm:$0xff]
    %v128 = vld [vmem:[#allocation4 + $0x48] sm:$0xff]
    %v129 = vld [vmem:[#allocation4 + $0x50] sm:$0xff]
    %v130 = vld [vmem:[#allocation4 + $0x58] sm:$0xff]
    %v131 = vld [vmem:[#allocation4 + $0x60] sm:$0xff]
    %v132 = vld [vmem:[#allocation4 + $0x68] sm:$0xff]
    %v133 = vld [vmem:[#allocation4 + $0x70] sm:$0xff]
    %v134 = vld [vmem:[#allocation4 + $0x78] sm:$0xff]
    %v135 = vld [vmem:[#allocation4 + $0x80] sm:$0xff]
    %v136 = vld [vmem:[#allocation4 + $0x88] sm:$0xff]
    %v137 = vld [vmem:[#allocation4 + $0x90] sm:$0xff]
    %v138 = vld [vmem:[#allocation4 + $0x98] sm:$0xff]
    %v139 = vld [vmem:[#allocation4 + $0xa0] sm:$0xff]
    %v140 = vld [vmem:[#allocation4 + $0xa8] sm:$0xff]
    %v141 = vld [vmem:[#allocation4 + $0xb0] sm:$0xff]
    %v142 = vld [vmem:[#allocation4 + $0xb8] sm:$0xff]
    %v143 = vld [vmem:[#allocation4 + $0xc0] sm:$0xff]
    %v144 = vld [vmem:[#allocation4 + $0xc8] sm:$0xff]
    %v145 = vld [vmem:[#allocation4 + $0xd0] sm:$0xff]
    %v146 = vld [vmem:[#allocation4 + $0xd8] sm:$0xff]
    %v147 = vld [vmem:[#allocation4 + $0xe0] sm:$0xff]
    %v148 = vld [vmem:[#allocation4 + $0xe8] sm:$0xff]
    %v149 = vld [vmem:[#allocation4 + $0xf0] sm:$0xff]
    %v150 = vld [vmem:[#allocation4 + $0xf8] sm:$0xff]
    %v151 = vpack.c.bf16 %v120, %v119
    %v152 = vpack.c.bf16 %v122, %v121
    %v153 = vpack.c.bf16 %v124, %v123
    %v154 = vpack.c.bf16 %v126, %v125
    %v155 = vpack.c.bf16 %v128, %v127
    %v156 = vpack.c.bf16 %v130, %v129
    %v157 = vpack.c.bf16 %v132, %v131
    %v158 = vpack.c.bf16 %v134, %v133
    %v159 = vpack.c.bf16 %v136, %v135
    %v160 = vpack.c.bf16 %v138, %v137
    %v161 = vpack.c.bf16 %v140, %v139
    %v162 = vpack.c.bf16 %v142, %v141
    %v163 = vpack.c.bf16 %v144, %v143
    %v164 = vpack.c.bf16 %v146, %v145
    %v165 = vpack.c.bf16 %v148, %v147
    %v166 = vpack.c.bf16 %v150, %v149
    %v167 = vld [vmem:[#allocation8] sm:$0xf]
    %v168 = vld [vmem:[#allocation8 + $0x4] sm:$0xf]
    %v169 = vld [vmem:[#allocation8 + $0x8] sm:$0xf]
    %v170 = vld [vmem:[#allocation8 + $0xc] sm:$0xf]
    %v171 = vld [vmem:[#allocation8 + $0x10] sm:$0xf]
    %v172 = vld [vmem:[#allocation8 + $0x14] sm:$0xf]
    %v173 = vld [vmem:[#allocation8 + $0x18] sm:$0xf]
    %v174 = vld [vmem:[#allocation8 + $0x1c] sm:$0xf]
    %v175 = vld [vmem:[#allocation10] sm:$0x1]
    %v177 = vlaneseq
    %v178 = vshrl.u32 %v177, 7
    %v179 = vsub.s32 0, %v178
    %v180 = vrot.slane %v175, %v179
    %v190 = vunpack.c.l.b16 %v167
    %v191 = vunpack.c.l.b16 %v168
    %v192 = vunpack.c.l.b16 %v169
    %v193 = vunpack.c.l.b16 %v170
    %v194 = vunpack.c.l.b16 %v171
    %v195 = vunpack.c.l.b16 %v172
    %v196 = vunpack.c.l.b16 %v173
    %v197 = vunpack.c.l.b16 %v174
    %v198 = vpack.c.b16 %v191, %v190
    %v199 = vpack.c.b16 %v193, %v192
    %v200 = vpack.c.b16 %v195, %v194
    %v201 = vpack.c.b16 %v197, %v196
    %vm206 = vcmask 523264
    %v208 = vsel %vm206, %v151, 0
    %v211 = vsel %vm206, %v152, 0
    %v214 = vsel %vm206, %v153, 0
    %v217 = vsel %vm206, %v154, 0
    %v220 = vsel %vm206, %v155, 0
    %v223 = vsel %vm206, %v156, 0
    %v226 = vsel %vm206, %v157, 0
    %v229 = vsel %vm206, %v158, 0
    %v232 = vsel %vm206, %v159, 0
    %v235 = vsel %vm206, %v160, 0
    %v238 = vsel %vm206, %v161, 0
    %v241 = vsel %vm206, %v162, 0
    %v244 = vsel %vm206, %v163, 0
    %v247 = vsel %vm206, %v164, 0
    %v250 = vsel %vm206, %v165, 0
    %v253 = vsel %vm206, %v166, 0
    %255 = vmatprep.subr.bf16.mxu0 0
    %256 = vmatpush1.bf16.msra.mxu0 %v198
    %257 = vmatprep.subr.bf16.mxu0 0
    %258 = vmatpush1.bf16.msra.mxu0 %v199
    %259 = vmatprep.subr.bf16.mxu0 0
    %260 = vmatpush1.bf16.msra.mxu0 %v200
    %261 = vmatprep.subr.bf16.mxu0 0
    %262 = vmatpush1.bf16.msra.mxu0 %v201
    %263 = vmatprep.subr.bf16.mxu0 0
    %264 = vmatpush1.bf16.msra.mxu0 0
    %265 = vmatprep.subr.bf16.mxu0 0
    %266 = vmatpush1.bf16.msra.mxu0 0
    %267 = vmatprep.subr.bf16.mxu0 0
    %268 = vmatpush1.bf16.msra.mxu0 0
    %269 = vmatprep.subr.bf16.mxu0 0
    %270 = vmatpush1.bf16.msra.mxu0 0
    %271 = vmatprep.subr.bf16.mxu0 0
    %272 = vmatpush1.bf16.msra.mxu0 0
    %273 = vmatprep.subr.bf16.mxu0 0
    %274 = vmatpush1.bf16.msra.mxu0 0
    %275 = vmatprep.subr.bf16.mxu0 0
    %276 = vmatpush1.bf16.msra.mxu0 0
    %277 = vmatprep.subr.bf16.mxu0 0
    %278 = vmatpush1.bf16.msra.mxu0 0
    %279 = vmatprep.subr.bf16.mxu0 0
    %280 = vmatpush1.bf16.msra.mxu0 0
    %281 = vmatprep.subr.bf16.mxu0 0
    %282 = vmatpush1.bf16.msra.mxu0 0
    %283 = vmatprep.subr.bf16.mxu0 0
    %284 = vmatpush1.bf16.msra.mxu0 0
    %285 = vmatprep.subr.bf16.mxu0 0
    %286 = vmatpush1.bf16.msra.mxu0 0
    %287 = vmatprep.mubr.bf16.mxu0 0
    %288 = vmatmul.mubr.bf16.gmra.mrb[0].mxu0 %v208
    %v289 = vpop.f32.mrb[0].mxu0
    %v290 = vadd.f32 %v180, %v289
    %v291 = vpop.f32.mrb[0].mxu0
    %v292 = vpop.f32.mrb[0].mxu0
    %v293 = vadd.f32 %v180, %v292
    %v294 = vpop.f32.mrb[0].mxu0
    %295 = vmatprep.mubr.bf16.mxu0 0
    %296 = vmatmul.mubr.bf16.gmra.mrb[0].mxu0 %v211
    %v297 = vpop.f32.mrb[0].mxu0
    %v298 = vadd.f32 %v180, %v297
    %v299 = vpop.f32.mrb[0].mxu0
    %v300 = vpop.f32.mrb[0].mxu0
    %v301 = vadd.f32 %v180, %v300
    %v302 = vpop.f32.mrb[0].mxu0
    %303 = vmatprep.mubr.bf16.mxu0 0
    %304 = vmatmul.mubr.bf16.gmra.mrb[0].mxu0 %v214
    %v305 = vpop.f32.mrb[0].mxu0
    %v306 = vadd.f32 %v180, %v305
    %v307 = vpop.f32.mrb[0].mxu0
    %v308 = vpop.f32.mrb[0].mxu0
    %v309 = vadd.f32 %v180, %v308
    %v310 = vpop.f32.mrb[0].mxu0
    %311 = vmatprep.mubr.bf16.mxu0 0
    %312 = vmatmul.mubr.bf16.gmra.mrb[0].mxu0 %v217
    %v313 = vpop.f32.mrb[0].mxu0
    %v314 = vadd.f32 %v180, %v313
    %v315 = vpop.f32.mrb[0].mxu0
    %v316 = vpop.f32.mrb[0].mxu0
    %v317 = vadd.f32 %v180, %v316
    %v318 = vpop.f32.mrb[0].mxu0
    %319 = vmatprep.mubr.bf16.mxu0 0
    %320 = vmatmul.mubr.bf16.gmra.mrb[0].mxu0 %v220
    %v321 = vpop.f32.mrb[0].mxu0
    %v322 = vadd.f32 %v180, %v321
    %v323 = vpop.f32.mrb[0].mxu0
    %v324 = vpop.f32.mrb[0].mxu0
    %v325 = vadd.f32 %v180, %v324
    %v326 = vpop.f32.mrb[0].mxu0
    %327 = vmatprep.mubr.bf16.mxu0 0
    %328 = vmatmul.mubr.bf16.gmra.mrb[0].mxu0 %v223
    %v329 = vpop.f32.mrb[0].mxu0
    %v330 = vadd.f32 %v180, %v329
    %v331 = vpop.f32.mrb[0].mxu0
    %v332 = vpop.f32.mrb[0].mxu0
    %v333 = vadd.f32 %v180, %v332
    %v334 = vpop.f32.mrb[0].mxu0
    %335 = vmatprep.mubr.bf16.mxu0 0
    %336 = vmatmul.mubr.bf16.gmra.mrb[0].mxu0 %v226
    %v337 = vpop.f32.mrb[0].mxu0
    %v338 = vadd.f32 %v180, %v337
    %v339 = vpop.f32.mrb[0].mxu0
    %v340 = vpop.f32.mrb[0].mxu0
    %v341 = vadd.f32 %v180, %v340
    %v342 = vpop.f32.mrb[0].mxu0
    %343 = vmatprep.mubr.bf16.mxu0 0
    %344 = vmatmul.mubr.bf16.gmra.mrb[0].mxu0 %v229
    %v345 = vpop.f32.mrb[0].mxu0
    %v346 = vadd.f32 %v180, %v345
    %v347 = vpop.f32.mrb[0].mxu0
    %v348 = vpop.f32.mrb[0].mxu0
    %v349 = vadd.f32 %v180, %v348
    %v350 = vpop.f32.mrb[0].mxu0
    %351 = vmatprep.mubr.bf16.mxu0 0
    %352 = vmatmul.mubr.bf16.gmra.mrb[0].mxu0 %v232
    %v353 = vpop.f32.mrb[0].mxu0
    %v354 = vadd.f32 %v180, %v353
    %v355 = vpop.f32.mrb[0].mxu0
    %v356 = vpop.f32.mrb[0].mxu0
    %v357 = vadd.f32 %v180, %v356
    %v358 = vpop.f32.mrb[0].mxu0
    %359 = vmatprep.mubr.bf16.mxu0 0
    %360 = vmatmul.mubr.bf16.gmra.mrb[0].mxu0 %v235
    %v361 = vpop.f32.mrb[0].mxu0
    %v362 = vadd.f32 %v180, %v361
    %v363 = vpop.f32.mrb[0].mxu0
    %v364 = vpop.f32.mrb[0].mxu0
    %v365 = vadd.f32 %v180, %v364
    %v366 = vpop.f32.mrb[0].mxu0
    %367 = vmatprep.mubr.bf16.mxu0 0
    %368 = vmatmul.mubr.bf16.gmra.mrb[0].mxu0 %v238
    %v369 = vpop.f32.mrb[0].mxu0
    %v370 = vadd.f32 %v180, %v369
    %v371 = vpop.f32.mrb[0].mxu0
    %v372 = vpop.f32.mrb[0].mxu0
    %v373 = vadd.f32 %v180, %v372
    %v374 = vpop.f32.mrb[0].mxu0
    %375 = vmatprep.mubr.bf16.mxu0 0
    %376 = vmatmul.mubr.bf16.gmra.mrb[0].mxu0 %v241
    %v377 = vpop.f32.mrb[0].mxu0
    %v378 = vadd.f32 %v180, %v377
    %v379 = vpop.f32.mrb[0].mxu0
    %v380 = vpop.f32.mrb[0].mxu0
    %v381 = vadd.f32 %v180, %v380
    %v382 = vpop.f32.mrb[0].mxu0
    %383 = vmatprep.mubr.bf16.mxu0 0
    %384 = vmatmul.mubr.bf16.gmra.mrb[0].mxu0 %v244
    %v385 = vpop.f32.mrb[0].mxu0
    %v386 = vadd.f32 %v180, %v385
    %v387 = vpop.f32.mrb[0].mxu0
    %v388 = vpop.f32.mrb[0].mxu0
    %v389 = vadd.f32 %v180, %v388
    %v390 = vpop.f32.mrb[0].mxu0
    %391 = vmatprep.mubr.bf16.mxu0 0
    %392 = vmatmul.mubr.bf16.gmra.mrb[0].mxu0 %v247
    %v393 = vpop.f32.mrb[0].mxu0
    %v394 = vadd.f32 %v180, %v393
    %v395 = vpop.f32.mrb[0].mxu0
    %v396 = vpop.f32.mrb[0].mxu0
    %v397 = vadd.f32 %v180, %v396
    %v398 = vpop.f32.mrb[0].mxu0
    %399 = vmatprep.mubr.bf16.mxu0 0
    %400 = vmatmul.mubr.bf16.gmra.mrb[0].mxu0 %v250
    %v401 = vpop.f32.mrb[0].mxu0
    %v402 = vadd.f32 %v180, %v401
    %v403 = vpop.f32.mrb[0].mxu0
    %v404 = vpop.f32.mrb[0].mxu0
    %v405 = vadd.f32 %v180, %v404
    %v406 = vpop.f32.mrb[0].mxu0
    %407 = vmatprep.mubr.bf16.mxu0 0
    %408 = vmatmul.mubr.bf16.gmra.mrb[0].mxu0 %v253
    %v409 = vpop.f32.mrb[0].mxu0
    %v410 = vadd.f32 %v180, %v409
    %v411 = vpop.f32.mrb[0].mxu0
    %v412 = vpop.f32.mrb[0].mxu0
    %v413 = vadd.f32 %v180, %v412
    %v414 = vpop.f32.mrb[0].mxu0
    %415 = vdwg.mxu0
    %v416 = vmax.f32 %v290, 0.0
    %v417 = vmax.f32 %v293, 0.0
    %v418 = vmax.f32 %v298, 0.0
    %v419 = vmax.f32 %v301, 0.0
    %v420 = vmax.f32 %v306, 0.0
    %v421 = vmax.f32 %v309, 0.0
    %v422 = vmax.f32 %v314, 0.0
    %v423 = vmax.f32 %v317, 0.0
    %v424 = vmax.f32 %v322, 0.0
    %v425 = vmax.f32 %v325, 0.0
    %v426 = vmax.f32 %v330, 0.0
    %v427 = vmax.f32 %v333, 0.0
    %v428 = vmax.f32 %v338, 0.0
    %v429 = vmax.f32 %v341, 0.0
    %v430 = vmax.f32 %v346, 0.0
    %v431 = vmax.f32 %v349, 0.0
    %v432 = vmax.f32 %v354, 0.0
    %v433 = vmax.f32 %v357, 0.0
    %v434 = vmax.f32 %v362, 0.0
    %v435 = vmax.f32 %v365, 0.0
    %v436 = vmax.f32 %v370, 0.0
    %v437 = vmax.f32 %v373, 0.0
    %v438 = vmax.f32 %v378, 0.0
    %v439 = vmax.f32 %v381, 0.0
    %v440 = vmax.f32 %v386, 0.0
    %v441 = vmax.f32 %v389, 0.0
    %v442 = vmax.f32 %v394, 0.0
    %v443 = vmax.f32 %v397, 0.0
    %v444 = vmax.f32 %v402, 0.0
    %v445 = vmax.f32 %v405, 0.0
    %v446 = vmax.f32 %v410, 0.0
    %v447 = vmax.f32 %v413, 0.0
    %448 = vst [vmem:[#allocation2] sm:$0xff] %v416
    %449 = vst [vmem:[#allocation2 + $0x8] sm:$0xff] %v417
    %450 = vst [vmem:[#allocation2 + $0x10] sm:$0xff] %v418
    %451 = vst [vmem:[#allocation2 + $0x18] sm:$0xff] %v419
    %452 = vst [vmem:[#allocation2 + $0x20] sm:$0xff] %v420
    %453 = vst [vmem:[#allocation2 + $0x28] sm:$0xff] %v421
    %454 = vst [vmem:[#allocation2 + $0x30] sm:$0xff] %v422
    %455 = vst [vmem:[#allocation2 + $0x38] sm:$0xff] %v423
    %456 = vst [vmem:[#allocation2 + $0x40] sm:$0xff] %v424
    %457 = vst [vmem:[#allocation2 + $0x48] sm:$0xff] %v425
    %458 = vst [vmem:[#allocation2 + $0x50] sm:$0xff] %v426
    %459 = vst [vmem:[#allocation2 + $0x58] sm:$0xff] %v427
    %460 = vst [vmem:[#allocation2 + $0x60] sm:$0xff] %v428
    %461 = vst [vmem:[#allocation2 + $0x68] sm:$0xff] %v429
    %462 = vst [vmem:[#allocation2 + $0x70] sm:$0xff] %v430
    %463 = vst [vmem:[#allocation2 + $0x78] sm:$0xff] %v431
    %464 = vst [vmem:[#allocation2 + $0x80] sm:$0xff] %v432
    %465 = vst [vmem:[#allocation2 + $0x88] sm:$0xff] %v433
    %466 = vst [vmem:[#allocation2 + $0x90] sm:$0xff] %v434
    %467 = vst [vmem:[#allocation2 + $0x98] sm:$0xff] %v435
    %468 = vst [vmem:[#allocation2 + $0xa0] sm:$0xff] %v436
    %469 = vst [vmem:[#allocation2 + $0xa8] sm:$0xff] %v437
    %470 = vst [vmem:[#allocation2 + $0xb0] sm:$0xff] %v438
    %471 = vst [vmem:[#allocation2 + $0xb8] sm:$0xff] %v439
    %472 = vst [vmem:[#allocation2 + $0xc0] sm:$0xff] %v440
    %473 = vst [vmem:[#allocation2 + $0xc8] sm:$0xff] %v441
    %474 = vst [vmem:[#allocation2 + $0xd0] sm:$0xff] %v442
    %475 = vst [vmem:[#allocation2 + $0xd8] sm:$0xff] %v443
    %476 = vst [vmem:[#allocation2 + $0xe0] sm:$0xff] %v444
    %477 = vst [vmem:[#allocation2 + $0xe8] sm:$0xff] %v445
    %478 = vst [vmem:[#allocation2 + $0xf0] sm:$0xff] %v446
    %479 = vst [vmem:[#allocation2 + $0xf8] sm:$0xff] %v447
    %v480 = vld [vmem:[#allocation2] sm:$0xff]
    %v481 = vld [vmem:[#allocation2 + $0x8] sm:$0xff]
    %v482 = vld [vmem:[#allocation2 + $0x10] sm:$0xff]
    %v483 = vld [vmem:[#allocation2 + $0x18] sm:$0xff]
    %v484 = vld [vmem:[#allocation2 + $0x20] sm:$0xff]
    %v485 = vld [vmem:[#allocation2 + $0x28] sm:$0xff]
    %v486 = vld [vmem:[#allocation2 + $0x30] sm:$0xff]
    %v487 = vld [vmem:[#allocation2 + $0x38] sm:$0xff]
    %v488 = vld [vmem:[#allocation2 + $0x40] sm:$0xff]
    %v489 = vld [vmem:[#allocation2 + $0x48] sm:$0xff]
    %v490 = vld [vmem:[#allocation2 + $0x50] sm:$0xff]
    %v491 = vld [vmem:[#allocation2 + $0x58] sm:$0xff]
    %v492 = vld [vmem:[#allocation2 + $0x60] sm:$0xff]
    %v493 = vld [vmem:[#allocation2 + $0x68] sm:$0xff]
    %v494 = vld [vmem:[#allocation2 + $0x70] sm:$0xff]
    %v495 = vld [vmem:[#allocation2 + $0x78] sm:$0xff]
    %v496 = vld [vmem:[#allocation2 + $0x80] sm:$0xff]
    %v497 = vld [vmem:[#allocation2 + $0x88] sm:$0xff]
    %v498 = vld [vmem:[#allocation2 + $0x90] sm:$0xff]
    %v499 = vld [vmem:[#allocation2 + $0x98] sm:$0xff]
    %v500 = vld [vmem:[#allocation2 + $0xa0] sm:$0xff]
    %v501 = vld [vmem:[#allocation2 + $0xa8] sm:$0xff]
    %v502 = vld [vmem:[#allocation2 + $0xb0] sm:$0xff]
    %v503 = vld [vmem:[#allocation2 + $0xb8] sm:$0xff]
    %v504 = vld [vmem:[#allocation2 + $0xc0] sm:$0xff]
    %v505 = vld [vmem:[#allocation2 + $0xc8] sm:$0xff]
    %v506 = vld [vmem:[#allocation2 + $0xd0] sm:$0xff]
    %v507 = vld [vmem:[#allocation2 + $0xd8] sm:$0xff]
    %v508 = vld [vmem:[#allocation2 + $0xe0] sm:$0xff]
    %v509 = vld [vmem:[#allocation2 + $0xe8] sm:$0xff]
    %v510 = vld [vmem:[#allocation2 + $0xf0] sm:$0xff]
    %v511 = vld [vmem:[#allocation2 + $0xf8] sm:$0xff]
    %v512 = vpack.c.bf16 %v481, %v480
    %v513 = vpack.c.bf16 %v483, %v482
    %v514 = vpack.c.bf16 %v485, %v484
    %v515 = vpack.c.bf16 %v487, %v486
    %v516 = vpack.c.bf16 %v489, %v488
    %v517 = vpack.c.bf16 %v491, %v490
    %v518 = vpack.c.bf16 %v493, %v492
    %v519 = vpack.c.bf16 %v495, %v494
    %v520 = vpack.c.bf16 %v497, %v496
    %v521 = vpack.c.bf16 %v499, %v498
    %v522 = vpack.c.bf16 %v501, %v500
    %v523 = vpack.c.bf16 %v503, %v502
    %v524 = vpack.c.bf16 %v505, %v504
    %v525 = vpack.c.bf16 %v507, %v506
    %v526 = vpack.c.bf16 %v509, %v508
    %v527 = vpack.c.bf16 %v511, %v510
    %v528 = vld [vmem:[#allocation11] sm:$0xf]
    %v529 = vld [vmem:[#allocation11 + $0x4] sm:$0xf]
    %v530 = vld [vmem:[#allocation11 + $0x8] sm:$0xf]
    %v531 = vld [vmem:[#allocation11 + $0xc] sm:$0xf]
    %v532 = vld [vmem:[#allocation11 + $0x10] sm:$0xf]
    %v533 = vld [vmem:[#allocation11 + $0x14] sm:$0xf]
    %v534 = vld [vmem:[#allocation11 + $0x18] sm:$0xf]
    %v535 = vld [vmem:[#allocation11 + $0x1c] sm:$0xf]
    %v536 = vld [vmem:[#allocation11 + $0x20] sm:$0xf]
    %v537 = vld [vmem:[#allocation11 + $0x24] sm:$0xf]
    %v538 = vld [vmem:[#allocation11 + $0x28] sm:$0xf]
    %v539 = vld [vmem:[#allocation11 + $0x2c] sm:$0xf]
    %v540 = vld [vmem:[#allocation11 + $0x30] sm:$0xf]
    %v541 = vld [vmem:[#allocation11 + $0x34] sm:$0xf]
    %v542 = vld [vmem:[#allocation11 + $0x38] sm:$0xf]
    %v543 = vld [vmem:[#allocation11 + $0x3c] sm:$0xf]
    %v544 = vld [vmem:[#allocation13] sm:$0x1]
    %v545 = vlaneseq
    %v546 = vshrl.u32 %v545, 7
    %v547 = vsub.s32 0, %v546
    %v548 = vrot.slane %v544, %v547
    %v565 = vunpack.c.l.b16 %v528
    %v566 = vunpack.c.l.b16 %v529
    %v567 = vunpack.c.l.b16 %v530
    %v568 = vunpack.c.l.b16 %v531
    %v569 = vunpack.c.l.b16 %v532
    %v570 = vunpack.c.l.b16 %v533
    %v571 = vunpack.c.l.b16 %v534
    %v572 = vunpack.c.l.b16 %v535
    %v573 = vunpack.c.l.b16 %v536
    %v574 = vunpack.c.l.b16 %v537
    %v575 = vunpack.c.l.b16 %v538
    %v576 = vunpack.c.l.b16 %v539
    %v577 = vunpack.c.l.b16 %v540
    %v578 = vunpack.c.l.b16 %v541
    %v579 = vunpack.c.l.b16 %v542
    %v580 = vunpack.c.l.b16 %v543
    %v581 = vpack.c.b16 %v566, %v565
    %v582 = vpack.c.b16 %v568, %v567
    %v583 = vpack.c.b16 %v570, %v569
    %v584 = vpack.c.b16 %v572, %v571
    %v585 = vpack.c.b16 %v574, %v573
    %v586 = vpack.c.b16 %v576, %v575
    %v587 = vpack.c.b16 %v578, %v577
    %v588 = vpack.c.b16 %v580, %v579
    %597 = vmatprep.subr.bf16.mxu0 0
    %598 = vmatpush1.bf16.msra.mxu0 %v581
    %599 = vmatprep.subr.bf16.mxu0 0
    %600 = vmatpush1.bf16.msra.mxu0 %v582
    %601 = vmatprep.subr.bf16.mxu0 0
    %602 = vmatpush1.bf16.msra.mxu0 %v583
    %603 = vmatprep.subr.bf16.mxu0 0
    %604 = vmatpush1.bf16.msra.mxu0 %v584
    %605 = vmatprep.subr.bf16.mxu0 0
    %606 = vmatpush1.bf16.msra.mxu0 %v585
    %607 = vmatprep.subr.bf16.mxu0 0
    %608 = vmatpush1.bf16.msra.mxu0 %v586
    %609 = vmatprep.subr.bf16.mxu0 0
    %610 = vmatpush1.bf16.msra.mxu0 %v587
    %611 = vmatprep.subr.bf16.mxu0 0
    %612 = vmatpush1.bf16.msra.mxu0 %v588
    %613 = vmatprep.subr.bf16.mxu0 0
    %614 = vmatpush1.bf16.msra.mxu0 0
    %615 = vmatprep.subr.bf16.mxu0 0
    %616 = vmatpush1.bf16.msra.mxu0 0
    %617 = vmatprep.subr.bf16.mxu0 0
    %618 = vmatpush1.bf16.msra.mxu0 0
    %619 = vmatprep.subr.bf16.mxu0 0
    %620 = vmatpush1.bf16.msra.mxu0 0
    %621 = vmatprep.subr.bf16.mxu0 0
    %622 = vmatpush1.bf16.msra.mxu0 0
    %623 = vmatprep.subr.bf16.mxu0 0
    %624 = vmatpush1.bf16.msra.mxu0 0
    %625 = vmatprep.subr.bf16.mxu0 0
    %626 = vmatpush1.bf16.msra.mxu0 0
    %627 = vmatprep.subr.bf16.mxu0 0
    %628 = vmatpush1.bf16.msra.mxu0 0
    %629 = vmatprep.mubr.bf16.mxu0 0
    %630 = vmatmul.mubr.bf16.gmra.mrb[0].mxu0 %v512
    %v631 = vpop.f32.mrb[0].mxu0
    %v632 = vadd.f32 %v548, %v631
    %v633 = vpop.f32.mrb[0].mxu0
    %v634 = vpop.f32.mrb[0].mxu0
    %v635 = vadd.f32 %v548, %v634
    %v636 = vpop.f32.mrb[0].mxu0
    %637 = vmatprep.mubr.bf16.mxu0 0
    %638 = vmatmul.mubr.bf16.gmra.mrb[0].mxu0 %v513
    %v639 = vpop.f32.mrb[0].mxu0
    %v640 = vadd.f32 %v548, %v639
    %v641 = vpop.f32.mrb[0].mxu0
    %v642 = vpop.f32.mrb[0].mxu0
    %v643 = vadd.f32 %v548, %v642
    %v644 = vpop.f32.mrb[0].mxu0
    %645 = vmatprep.mubr.bf16.mxu0 0
    %646 = vmatmul.mubr.bf16.gmra.mrb[0].mxu0 %v514
    %v647 = vpop.f32.mrb[0].mxu0
    %v648 = vadd.f32 %v548, %v647
    %v649 = vpop.f32.mrb[0].mxu0
    %v650 = vpop.f32.mrb[0].mxu0
    %v651 = vadd.f32 %v548, %v650
    %v652 = vpop.f32.mrb[0].mxu0
    %653 = vmatprep.mubr.bf16.mxu0 0
    %654 = vmatmul.mubr.bf16.gmra.mrb[0].mxu0 %v515
    %v655 = vpop.f32.mrb[0].mxu0
    %v656 = vadd.f32 %v548, %v655
    %v657 = vpop.f32.mrb[0].mxu0
    %v658 = vpop.f32.mrb[0].mxu0
    %v659 = vadd.f32 %v548, %v658
    %v660 = vpop.f32.mrb[0].mxu0
    %661 = vmatprep.mubr.bf16.mxu0 0
    %662 = vmatmul.mubr.bf16.gmra.mrb[0].mxu0 %v516
    %v663 = vpop.f32.mrb[0].mxu0
    %v664 = vadd.f32 %v548, %v663
    %v665 = vpop.f32.mrb[0].mxu0
    %v666 = vpop.f32.mrb[0].mxu0
    %v667 = vadd.f32 %v548, %v666
    %v668 = vpop.f32.mrb[0].mxu0
    %669 = vmatprep.mubr.bf16.mxu0 0
    %670 = vmatmul.mubr.bf16.gmra.mrb[0].mxu0 %v517
    %v671 = vpop.f32.mrb[0].mxu0
    %v672 = vadd.f32 %v548, %v671
    %v673 = vpop.f32.mrb[0].mxu0
    %v674 = vpop.f32.mrb[0].mxu0
    %v675 = vadd.f32 %v548, %v674
    %v676 = vpop.f32.mrb[0].mxu0
    %677 = vmatprep.mubr.bf16.mxu0 0
    %678 = vmatmul.mubr.bf16.gmra.mrb[0].mxu0 %v518
    %v679 = vpop.f32.mrb[0].mxu0
    %v680 = vadd.f32 %v548, %v679
    %v681 = vpop.f32.mrb[0].mxu0
    %v682 = vpop.f32.mrb[0].mxu0
    %v683 = vadd.f32 %v548, %v682
    %v684 = vpop.f32.mrb[0].mxu0
    %685 = vmatprep.mubr.bf16.mxu0 0
    %686 = vmatmul.mubr.bf16.gmra.mrb[0].mxu0 %v519
    %v687 = vpop.f32.mrb[0].mxu0
    %v688 = vadd.f32 %v548, %v687
    %v689 = vpop.f32.mrb[0].mxu0
    %v690 = vpop.f32.mrb[0].mxu0
    %v691 = vadd.f32 %v548, %v690
    %v692 = vpop.f32.mrb[0].mxu0
    %693 = vmatprep.mubr.bf16.mxu0 0
    %694 = vmatmul.mubr.bf16.gmra.mrb[0].mxu0 %v520
    %v695 = vpop.f32.mrb[0].mxu0
    %v696 = vadd.f32 %v548, %v695
    %v697 = vpop.f32.mrb[0].mxu0
    %v698 = vpop.f32.mrb[0].mxu0
    %v699 = vadd.f32 %v548, %v698
    %v700 = vpop.f32.mrb[0].mxu0
    %701 = vmatprep.mubr.bf16.mxu0 0
    %702 = vmatmul.mubr.bf16.gmra.mrb[0].mxu0 %v521
    %v703 = vpop.f32.mrb[0].mxu0
    %v704 = vadd.f32 %v548, %v703
    %v705 = vpop.f32.mrb[0].mxu0
    %v706 = vpop.f32.mrb[0].mxu0
    %v707 = vadd.f32 %v548, %v706
    %v708 = vpop.f32.mrb[0].mxu0
    %709 = vmatprep.mubr.bf16.mxu0 0
    %710 = vmatmul.mubr.bf16.gmra.mrb[0].mxu0 %v522
    %v711 = vpop.f32.mrb[0].mxu0
    %v712 = vadd.f32 %v548, %v711
    %v713 = vpop.f32.mrb[0].mxu0
    %v714 = vpop.f32.mrb[0].mxu0
    %v715 = vadd.f32 %v548, %v714
    %v716 = vpop.f32.mrb[0].mxu0
    %717 = vmatprep.mubr.bf16.mxu0 0
    %718 = vmatmul.mubr.bf16.gmra.mrb[0].mxu0 %v523
    %v719 = vpop.f32.mrb[0].mxu0
    %v720 = vadd.f32 %v548, %v719
    %v721 = vpop.f32.mrb[0].mxu0
    %v722 = vpop.f32.mrb[0].mxu0
    %v723 = vadd.f32 %v548, %v722
    %v724 = vpop.f32.mrb[0].mxu0
    %725 = vmatprep.mubr.bf16.mxu0 0
    %726 = vmatmul.mubr.bf16.gmra.mrb[0].mxu0 %v524
    %v727 = vpop.f32.mrb[0].mxu0
    %v728 = vadd.f32 %v548, %v727
    %v729 = vpop.f32.mrb[0].mxu0
    %v730 = vpop.f32.mrb[0].mxu0
    %v731 = vadd.f32 %v548, %v730
    %v732 = vpop.f32.mrb[0].mxu0
    %733 = vmatprep.mubr.bf16.mxu0 0
    %734 = vmatmul.mubr.bf16.gmra.mrb[0].mxu0 %v525
    %v735 = vpop.f32.mrb[0].mxu0
    %v736 = vadd.f32 %v548, %v735
    %v737 = vpop.f32.mrb[0].mxu0
    %v738 = vpop.f32.mrb[0].mxu0
    %v739 = vadd.f32 %v548, %v738
    %v740 = vpop.f32.mrb[0].mxu0
    %741 = vmatprep.mubr.bf16.mxu0 0
    %742 = vmatmul.mubr.bf16.gmra.mrb[0].mxu0 %v526
    %v743 = vpop.f32.mrb[0].mxu0
    %v744 = vadd.f32 %v548, %v743
    %v745 = vpop.f32.mrb[0].mxu0
    %v746 = vpop.f32.mrb[0].mxu0
    %v747 = vadd.f32 %v548, %v746
    %v748 = vpop.f32.mrb[0].mxu0
    %749 = vmatprep.mubr.bf16.mxu0 0
    %750 = vmatmul.mubr.bf16.gmra.mrb[0].mxu0 %v527
    %v751 = vpop.f32.mrb[0].mxu0
    %v752 = vadd.f32 %v548, %v751
    %v753 = vpop.f32.mrb[0].mxu0
    %v754 = vpop.f32.mrb[0].mxu0
    %v755 = vadd.f32 %v548, %v754
    %v756 = vpop.f32.mrb[0].mxu0
    %757 = vdwg.mxu0
    %s758 = sld [smem:[#allocation14]]
    %v759 = vstv %s758
    %v760 = vmul.f32 %v759, %v632
    %v761 = vmul.f32 %v759, %v635
    %v762 = vmul.f32 %v759, %v640
    %v763 = vmul.f32 %v759, %v643
    %v764 = vmul.f32 %v759, %v648
    %v765 = vmul.f32 %v759, %v651
    %v766 = vmul.f32 %v759, %v656
    %v767 = vmul.f32 %v759, %v659
    %v768 = vmul.f32 %v759, %v664
    %v769 = vmul.f32 %v759, %v667
    %v770 = vmul.f32 %v759, %v672
    %v771 = vmul.f32 %v759, %v675
    %v772 = vmul.f32 %v759, %v680
    %v773 = vmul.f32 %v759, %v683
    %v774 = vmul.f32 %v759, %v688
    %v775 = vmul.f32 %v759, %v691
    %v776 = vmul.f32 %v759, %v696
    %v777 = vmul.f32 %v759, %v699
    %v778 = vmul.f32 %v759, %v704
    %v779 = vmul.f32 %v759, %v707
    %v780 = vmul.f32 %v759, %v712
    %v781 = vmul.f32 %v759, %v715
    %v782 = vmul.f32 %v759, %v720
    %v783 = vmul.f32 %v759, %v723
    %v784 = vmul.f32 %v759, %v728
    %v785 = vmul.f32 %v759, %v731
    %v786 = vmul.f32 %v759, %v736
    %v787 = vmul.f32 %v759, %v739
    %v788 = vmul.f32 %v759, %v744
    %v789 = vmul.f32 %v759, %v747
    %v790 = vmul.f32 %v759, %v752
    %v791 = vmul.f32 %v759, %v755
    %v792 = vadd.f32 %v480, %v760
    %v793 = vadd.f32 %v481, %v761
    %v794 = vadd.f32 %v482, %v762
    %v795 = vadd.f32 %v483, %v763
    %v796 = vadd.f32 %v484, %v764
    %v797 = vadd.f32 %v485, %v765
    %v798 = vadd.f32 %v486, %v766
    %v799 = vadd.f32 %v487, %v767
    %v800 = vadd.f32 %v488, %v768
    %v801 = vadd.f32 %v489, %v769
    %v802 = vadd.f32 %v490, %v770
    %v803 = vadd.f32 %v491, %v771
    %v804 = vadd.f32 %v492, %v772
    %v805 = vadd.f32 %v493, %v773
    %v806 = vadd.f32 %v494, %v774
    %v807 = vadd.f32 %v495, %v775
    %v808 = vadd.f32 %v496, %v776
    %v809 = vadd.f32 %v497, %v777
    %v810 = vadd.f32 %v498, %v778
    %v811 = vadd.f32 %v499, %v779
    %v812 = vadd.f32 %v500, %v780
    %v813 = vadd.f32 %v501, %v781
    %v814 = vadd.f32 %v502, %v782
    %v815 = vadd.f32 %v503, %v783
    %v816 = vadd.f32 %v504, %v784
    %v817 = vadd.f32 %v505, %v785
    %v818 = vadd.f32 %v506, %v786
    %v819 = vadd.f32 %v507, %v787
    %v820 = vadd.f32 %v508, %v788
    %v821 = vadd.f32 %v509, %v789
    %v822 = vadd.f32 %v510, %v790
    %v823 = vadd.f32 %v511, %v791
    %v824 = vmax.f32 %v792, 0.0
    %v825 = vmax.f32 %v793, 0.0
    %v826 = vmax.f32 %v794, 0.0
    %v827 = vmax.f32 %v795, 0.0
    %v828 = vmax.f32 %v796, 0.0
    %v829 = vmax.f32 %v797, 0.0
    %v830 = vmax.f32 %v798, 0.0
    %v831 = vmax.f32 %v799, 0.0
    %v832 = vmax.f32 %v800, 0.0
    %v833 = vmax.f32 %v801, 0.0
    %v834 = vmax.f32 %v802, 0.0
    %v835 = vmax.f32 %v803, 0.0
    %v836 = vmax.f32 %v804, 0.0
    %v837 = vmax.f32 %v805, 0.0
    %v838 = vmax.f32 %v806, 0.0
    %v839 = vmax.f32 %v807, 0.0
    %v840 = vmax.f32 %v808, 0.0
    %v841 = vmax.f32 %v809, 0.0
    %v842 = vmax.f32 %v810, 0.0
    %v843 = vmax.f32 %v811, 0.0
    %v844 = vmax.f32 %v812, 0.0
    %v845 = vmax.f32 %v813, 0.0
    %v846 = vmax.f32 %v814, 0.0
    %v847 = vmax.f32 %v815, 0.0
    %v848 = vmax.f32 %v816, 0.0
    %v849 = vmax.f32 %v817, 0.0
    %v850 = vmax.f32 %v818, 0.0
    %v851 = vmax.f32 %v819, 0.0
    %v852 = vmax.f32 %v820, 0.0
    %v853 = vmax.f32 %v821, 0.0
    %v854 = vmax.f32 %v822, 0.0
    %v855 = vmax.f32 %v823, 0.0
    %856 = vst [vmem:[#allocation2] sm:$0xff] %v824
    %857 = vst [vmem:[#allocation2 + $0x8] sm:$0xff] %v825
    %858 = vst [vmem:[#allocation2 + $0x10] sm:$0xff] %v826
    %859 = vst [vmem:[#allocation2 + $0x18] sm:$0xff] %v827
    %860 = vst [vmem:[#allocation2 + $0x20] sm:$0xff] %v828
    %861 = vst [vmem:[#allocation2 + $0x28] sm:$0xff] %v829
    %862 = vst [vmem:[#allocation2 + $0x30] sm:$0xff] %v830
    %863 = vst [vmem:[#allocation2 + $0x38] sm:$0xff] %v831
    %864 = vst [vmem:[#allocation2 + $0x40] sm:$0xff] %v832
    %865 = vst [vmem:[#allocation2 + $0x48] sm:$0xff] %v833
    %866 = vst [vmem:[#allocation2 + $0x50] sm:$0xff] %v834
    %867 = vst [vmem:[#allocation2 + $0x58] sm:$0xff] %v835
    %868 = vst [vmem:[#allocation2 + $0x60] sm:$0xff] %v836
    %869 = vst [vmem:[#allocation2 + $0x68] sm:$0xff] %v837
    %870 = vst [vmem:[#allocation2 + $0x70] sm:$0xff] %v838
    %871 = vst [vmem:[#allocation2 + $0x78] sm:$0xff] %v839
    %872 = vst [vmem:[#allocation2 + $0x80] sm:$0xff] %v840
    %873 = vst [vmem:[#allocation2 + $0x88] sm:$0xff] %v841
    %874 = vst [vmem:[#allocation2 + $0x90] sm:$0xff] %v842
    %875 = vst [vmem:[#allocation2 + $0x98] sm:$0xff] %v843
    %876 = vst [vmem:[#allocation2 + $0xa0] sm:$0xff] %v844
    %877 = vst [vmem:[#allocation2 + $0xa8] sm:$0xff] %v845
    %878 = vst [vmem:[#allocation2 + $0xb0] sm:$0xff] %v846
    %879 = vst [vmem:[#allocation2 + $0xb8] sm:$0xff] %v847
    %880 = vst [vmem:[#allocation2 + $0xc0] sm:$0xff] %v848
    %881 = vst [vmem:[#allocation2 + $0xc8] sm:$0xff] %v849
    %882 = vst [vmem:[#allocation2 + $0xd0] sm:$0xff] %v850
    %883 = vst [vmem:[#allocation2 + $0xd8] sm:$0xff] %v851
    %884 = vst [vmem:[#allocation2 + $0xe0] sm:$0xff] %v852
    %885 = vst [vmem:[#allocation2 + $0xe8] sm:$0xff] %v853
    %886 = vst [vmem:[#allocation2 + $0xf0] sm:$0xff] %v854
    %887 = vst [vmem:[#allocation2 + $0xf8] sm:$0xff] %v855
    %v888 = vld [vmem:[#allocation2] sm:$0xff]
    %v889 = vld [vmem:[#allocation2 + $0x8] sm:$0xff]
    %v890 = vld [vmem:[#allocation2 + $0x10] sm:$0xff]
    %v891 = vld [vmem:[#allocation2 + $0x18] sm:$0xff]
    %v892 = vld [vmem:[#allocation2 + $0x20] sm:$0xff]
    %v893 = vld [vmem:[#allocation2 + $0x28] sm:$0xff]
    %v894 = vld [vmem:[#allocation2 + $0x30] sm:$0xff]
    %v895 = vld [vmem:[#allocation2 + $0x38] sm:$0xff]
    %v896 = vld [vmem:[#allocation2 + $0x40] sm:$0xff]
    %v897 = vld [vmem:[#allocation2 + $0x48] sm:$0xff]
    %v898 = vld [vmem:[#allocation2 + $0x50] sm:$0xff]
    %v899 = vld [vmem:[#allocation2 + $0x58] sm:$0xff]
    %v900 = vld [vmem:[#allocation2 + $0x60] sm:$0xff]
    %v901 = vld [vmem:[#allocation2 + $0x68] sm:$0xff]
    %v902 = vld [vmem:[#allocation2 + $0x70] sm:$0xff]
    %v903 = vld [vmem:[#allocation2 + $0x78] sm:$0xff]
    %v904 = vld [vmem:[#allocation2 + $0x80] sm:$0xff]
    %v905 = vld [vmem:[#allocation2 + $0x88] sm:$0xff]
    %v906 = vld [vmem:[#allocation2 + $0x90] sm:$0xff]
    %v907 = vld [vmem:[#allocation2 + $0x98] sm:$0xff]
    %v908 = vld [vmem:[#allocation2 + $0xa0] sm:$0xff]
    %v909 = vld [vmem:[#allocation2 + $0xa8] sm:$0xff]
    %v910 = vld [vmem:[#allocation2 + $0xb0] sm:$0xff]
    %v911 = vld [vmem:[#allocation2 + $0xb8] sm:$0xff]
    %v912 = vld [vmem:[#allocation2 + $0xc0] sm:$0xff]
    %v913 = vld [vmem:[#allocation2 + $0xc8] sm:$0xff]
    %v914 = vld [vmem:[#allocation2 + $0xd0] sm:$0xff]
    %v915 = vld [vmem:[#allocation2 + $0xd8] sm:$0xff]
    %v916 = vld [vmem:[#allocation2 + $0xe0] sm:$0xff]
    %v917 = vld [vmem:[#allocation2 + $0xe8] sm:$0xff]
    %v918 = vld [vmem:[#allocation2 + $0xf0] sm:$0xff]
    %v919 = vld [vmem:[#allocation2 + $0xf8] sm:$0xff]
    %v920 = vpack.c.bf16 %v889, %v888
    %v921 = vpack.c.bf16 %v891, %v890
    %v922 = vpack.c.bf16 %v893, %v892
    %v923 = vpack.c.bf16 %v895, %v894
    %v924 = vpack.c.bf16 %v897, %v896
    %v925 = vpack.c.bf16 %v899, %v898
    %v926 = vpack.c.bf16 %v901, %v900
    %v927 = vpack.c.bf16 %v903, %v902
    %v928 = vpack.c.bf16 %v905, %v904
    %v929 = vpack.c.bf16 %v907, %v906
    %v930 = vpack.c.bf16 %v909, %v908
    %v931 = vpack.c.bf16 %v911, %v910
    %v932 = vpack.c.bf16 %v913, %v912
    %v933 = vpack.c.bf16 %v915, %v914
    %v934 = vpack.c.bf16 %v917, %v916
    %v935 = vpack.c.bf16 %v919, %v918
    %s936 = scalar_lea.vmem [#allocation11], 64
    %v937 = vld [vmem:[%s936] sm:$0xf]
    %v938 = vld [vmem:[%s936 + $0x4] sm:$0xf]
    %v939 = vld [vmem:[%s936 + $0x8] sm:$0xf]
    %v940 = vld [vmem:[%s936 + $0xc] sm:$0xf]
    %v941 = vld [vmem:[%s936 + $0x10] sm:$0xf]
    %v942 = vld [vmem:[%s936 + $0x14] sm:$0xf]
    %v943 = vld [vmem:[%s936 + $0x18] sm:$0xf]
    %v944 = vld [vmem:[%s936 + $0x1c] sm:$0xf]
    %v945 = vld [vmem:[%s936 + $0x20] sm:$0xf]
    %v946 = vld [vmem:[%s936 + $0x24] sm:$0xf]
    %v947 = vld [vmem:[%s936 + $0x28] sm:$0xf]
    %v948 = vld [vmem:[%s936 + $0x2c] sm:$0xf]
    %v949 = vld [vmem:[%s936 + $0x30] sm:$0xf]
    %v950 = vld [vmem:[%s936 + $0x34] sm:$0xf]
    %v951 = vld [vmem:[%s936 + $0x38] sm:$0xf]
    %v952 = vld [vmem:[%s936 + $0x3c] sm:$0xf]
    %v953 = vld [vmem:[#allocation13 + $0x1] sm:$0x1]
    %v954 = vlaneseq
    %v955 = vshrl.u32 %v954, 7
    %v956 = vsub.s32 0, %v955
    %v957 = vrot.slane %v953, %v956
    %v974 = vunpack.c.l.b16 %v937
    %v975 = vunpack.c.l.b16 %v938
    %v976 = vunpack.c.l.b16 %v939
    %v977 = vunpack.c.l.b16 %v940
    %v978 = vunpack.c.l.b16 %v941
    %v979 = vunpack.c.l.b16 %v942
    %v980 = vunpack.c.l.b16 %v943
    %v981 = vunpack.c.l.b16 %v944
    %v982 = vunpack.c.l.b16 %v945
    %v983 = vunpack.c.l.b16 %v946
    %v984 = vunpack.c.l.b16 %v947
    %v985 = vunpack.c.l.b16 %v948
    %v986 = vunpack.c.l.b16 %v949
    %v987 = vunpack.c.l.b16 %v950
    %v988 = vunpack.c.l.b16 %v951
    %v989 = vunpack.c.l.b16 %v952
    %v990 = vpack.c.b16 %v975, %v974
    %v991 = vpack.c.b16 %v977, %v976
    %v992 = vpack.c.b16 %v979, %v978
    %v993 = vpack.c.b16 %v981, %v980
    %v994 = vpack.c.b16 %v983, %v982
    %v995 = vpack.c.b16 %v985, %v984
    %v996 = vpack.c.b16 %v987, %v986
    %v997 = vpack.c.b16 %v989, %v988
    %1006 = vmatprep.subr.bf16.mxu0 0
    %1007 = vmatpush1.bf16.msra.mxu0 %v990
    %1008 = vmatprep.subr.bf16.mxu0 0
    %1009 = vmatpush1.bf16.msra.mxu0 %v991
    %1010 = vmatprep.subr.bf16.mxu0 0
    %1011 = vmatpush1.bf16.msra.mxu0 %v992
    %1012 = vmatprep.subr.bf16.mxu0 0
    %1013 = vmatpush1.bf16.msra.mxu0 %v993
    %1014 = vmatprep.subr.bf16.mxu0 0
    %1015 = vmatpush1.bf16.msra.mxu0 %v994
    %1016 = vmatprep.subr.bf16.mxu0 0
    %1017 = vmatpush1.bf16.msra.mxu0 %v995
    %1018 = vmatprep.subr.bf16.mxu0 0
    %1019 = vmatpush1.bf16.msra.mxu0 %v996
    %1020 = vmatprep.subr.bf16.mxu0 0
    %1021 = vmatpush1.bf16.msra.mxu0 %v997
    %1022 = vmatprep.subr.bf16.mxu0 0
    %1023 = vmatpush1.bf16.msra.mxu0 0
    %1024 = vmatprep.subr.bf16.mxu0 0
    %1025 = vmatpush1.bf16.msra.mxu0 0
    %1026 = vmatprep.subr.bf16.mxu0 0
    %1027 = vmatpush1.bf16.msra.mxu0 0
    %1028 = vmatprep.subr.bf16.mxu0 0
    %1029 = vmatpush1.bf16.msra.mxu0 0
    %1030 = vmatprep.subr.bf16.mxu0 0
    %1031 = vmatpush1.bf16.msra.mxu0 0
    %1032 = vmatprep.subr.bf16.mxu0 0
    %1033 = vmatpush1.bf16.msra.mxu0 0
    %1034 = vmatprep.subr.bf16.mxu0 0
    %1035 = vmatpush1.bf16.msra.mxu0 0
    %1036 = vmatprep.subr.bf16.mxu0 0
    %1037 = vmatpush1.bf16.msra.mxu0 0
    %1038 = vmatprep.mubr.bf16.mxu0 0
    %1039 = vmatmul.mubr.bf16.gmra.mrb[0].mxu0 %v920
    %v1040 = vpop.f32.mrb[0].mxu0
    %v1041 = vadd.f32 %v957, %v1040
    %v1042 = vpop.f32.mrb[0].mxu0
    %v1043 = vpop.f32.mrb[0].mxu0
    %v1044 = vadd.f32 %v957, %v1043
    %v1045 = vpop.f32.mrb[0].mxu0
    %1046 = vmatprep.mubr.bf16.mxu0 0
    %1047 = vmatmul.mubr.bf16.gmra.mrb[0].mxu0 %v921
    %v1048 = vpop.f32.mrb[0].mxu0
    %v1049 = vadd.f32 %v957, %v1048
    %v1050 = vpop.f32.mrb[0].mxu0
    %v1051 = vpop.f32.mrb[0].mxu0
    %v1052 = vadd.f32 %v957, %v1051
    %v1053 = vpop.f32.mrb[0].mxu0
    %1054 = vmatprep.mubr.bf16.mxu0 0
    %1055 = vmatmul.mubr.bf16.gmra.mrb[0].mxu0 %v922
    %v1056 = vpop.f32.mrb[0].mxu0
    %v1057 = vadd.f32 %v957, %v1056
    %v1058 = vpop.f32.mrb[0].mxu0
    %v1059 = vpop.f32.mrb[0].mxu0
    %v1060 = vadd.f32 %v957, %v1059
    %v1061 = vpop.f32.mrb[0].mxu0
    %1062 = vmatprep.mubr.bf16.mxu0 0
    %1063 = vmatmul.mubr.bf16.gmra.mrb[0].mxu0 %v923
    %v1064 = vpop.f32.mrb[0].mxu0
    %v1065 = vadd.f32 %v957, %v1064
    %v1066 = vpop.f32.mrb[0].mxu0
    %v1067 = vpop.f32.mrb[0].mxu0
    %v1068 = vadd.f32 %v957, %v1067
    %v1069 = vpop.f32.mrb[0].mxu0
    %1070 = vmatprep.mubr.bf16.mxu0 0
    %1071 = vmatmul.mubr.bf16.gmra.mrb[0].mxu0 %v924
    %v1072 = vpop.f32.mrb[0].mxu0
    %v1073 = vadd.f32 %v957, %v1072
    %v1074 = vpop.f32.mrb[0].mxu0
    %v1075 = vpop.f32.mrb[0].mxu0
    %v1076 = vadd.f32 %v957, %v1075
    %v1077 = vpop.f32.mrb[0].mxu0
    %1078 = vmatprep.mubr.bf16.mxu0 0
    %1079 = vmatmul.mubr.bf16.gmra.mrb[0].mxu0 %v925
    %v1080 = vpop.f32.mrb[0].mxu0
    %v1081 = vadd.f32 %v957, %v1080
    %v1082 = vpop.f32.mrb[0].mxu0
    %v1083 = vpop.f32.mrb[0].mxu0
    %v1084 = vadd.f32 %v957, %v1083
    %v1085 = vpop.f32.mrb[0].mxu0
    %1086 = vmatprep.mubr.bf16.mxu0 0
    %1087 = vmatmul.mubr.bf16.gmra.mrb[0].mxu0 %v926
    %v1088 = vpop.f32.mrb[0].mxu0
    %v1089 = vadd.f32 %v957, %v1088
    %v1090 = vpop.f32.mrb[0].mxu0
    %v1091 = vpop.f32.mrb[0].mxu0
    %v1092 = vadd.f32 %v957, %v1091
    %v1093 = vpop.f32.mrb[0].mxu0
    %1094 = vmatprep.mubr.bf16.mxu0 0
    %1095 = vmatmul.mubr.bf16.gmra.mrb[0].mxu0 %v927
    %v1096 = vpop.f32.mrb[0].mxu0
    %v1097 = vadd.f32 %v957, %v1096
    %v1098 = vpop.f32.mrb[0].mxu0
    %v1099 = vpop.f32.mrb[0].mxu0
    %v1100 = vadd.f32 %v957, %v1099
    %v1101 = vpop.f32.mrb[0].mxu0
    %1102 = vmatprep.mubr.bf16.mxu0 0
    %1103 = vmatmul.mubr.bf16.gmra.mrb[0].mxu0 %v928
    %v1104 = vpop.f32.mrb[0].mxu0
    %v1105 = vadd.f32 %v957, %v1104
    %v1106 = vpop.f32.mrb[0].mxu0
    %v1107 = vpop.f32.mrb[0].mxu0
    %v1108 = vadd.f32 %v957, %v1107
    %v1109 = vpop.f32.mrb[0].mxu0
    %1110 = vmatprep.mubr.bf16.mxu0 0
    %1111 = vmatmul.mubr.bf16.gmra.mrb[0].mxu0 %v929
    %v1112 = vpop.f32.mrb[0].mxu0
    %v1113 = vadd.f32 %v957, %v1112
    %v1114 = vpop.f32.mrb[0].mxu0
    %v1115 = vpop.f32.mrb[0].mxu0
    %v1116 = vadd.f32 %v957, %v1115
    %v1117 = vpop.f32.mrb[0].mxu0
    %1118 = vmatprep.mubr.bf16.mxu0 0
    %1119 = vmatmul.mubr.bf16.gmra.mrb[0].mxu0 %v930
    %v1120 = vpop.f32.mrb[0].mxu0
    %v1121 = vadd.f32 %v957, %v1120
    %v1122 = vpop.f32.mrb[0].mxu0
    %v1123 = vpop.f32.mrb[0].mxu0
    %v1124 = vadd.f32 %v957, %v1123
    %v1125 = vpop.f32.mrb[0].mxu0
    %1126 = vmatprep.mubr.bf16.mxu0 0
    %1127 = vmatmul.mubr.bf16.gmra.mrb[0].mxu0 %v931
    %v1128 = vpop.f32.mrb[0].mxu0
    %v1129 = vadd.f32 %v957, %v1128
    %v1130 = vpop.f32.mrb[0].mxu0
    %v1131 = vpop.f32.mrb[0].mxu0
    %v1132 = vadd.f32 %v957, %v1131
    %v1133 = vpop.f32.mrb[0].mxu0
    %1134 = vmatprep.mubr.bf16.mxu0 0
    %1135 = vmatmul.mubr.bf16.gmra.mrb[0].mxu0 %v932
    %v1136 = vpop.f32.mrb[0].mxu0
    %v1137 = vadd.f32 %v957, %v1136
    %v1138 = vpop.f32.mrb[0].mxu0
    %v1139 = vpop.f32.mrb[0].mxu0
    %v1140 = vadd.f32 %v957, %v1139
    %v1141 = vpop.f32.mrb[0].mxu0
    %1142 = vmatprep.mubr.bf16.mxu0 0
    %1143 = vmatmul.mubr.bf16.gmra.mrb[0].mxu0 %v933
    %v1144 = vpop.f32.mrb[0].mxu0
    %v1145 = vadd.f32 %v957, %v1144
    %v1146 = vpop.f32.mrb[0].mxu0
    %v1147 = vpop.f32.mrb[0].mxu0
    %v1148 = vadd.f32 %v957, %v1147
    %v1149 = vpop.f32.mrb[0].mxu0
    %1150 = vmatprep.mubr.bf16.mxu0 0
    %1151 = vmatmul.mubr.bf16.gmra.mrb[0].mxu0 %v934
    %v1152 = vpop.f32.mrb[0].mxu0
    %v1153 = vadd.f32 %v957, %v1152
    %v1154 = vpop.f32.mrb[0].mxu0
    %v1155 = vpop.f32.mrb[0].mxu0
    %v1156 = vadd.f32 %v957, %v1155
    %v1157 = vpop.f32.mrb[0].mxu0
    %1158 = vmatprep.mubr.bf16.mxu0 0
    %1159 = vmatmul.mubr.bf16.gmra.mrb[0].mxu0 %v935
    %v1160 = vpop.f32.mrb[0].mxu0
    %v1161 = vadd.f32 %v957, %v1160
    %v1162 = vpop.f32.mrb[0].mxu0
    %v1163 = vpop.f32.mrb[0].mxu0
    %v1164 = vadd.f32 %v957, %v1163
    %v1165 = vpop.f32.mrb[0].mxu0
    %1166 = vdwg.mxu0
    %s1167 = sld [smem:[#allocation14 + $0x1]]
    %v1168 = vstv %s1167
    %v1169 = vmul.f32 %v1168, %v1041
    %v1170 = vmul.f32 %v1168, %v1044
    %v1171 = vmul.f32 %v1168, %v1049
    %v1172 = vmul.f32 %v1168, %v1052
    %v1173 = vmul.f32 %v1168, %v1057
    %v1174 = vmul.f32 %v1168, %v1060
    %v1175 = vmul.f32 %v1168, %v1065
    %v1176 = vmul.f32 %v1168, %v1068
    %v1177 = vmul.f32 %v1168, %v1073
    %v1178 = vmul.f32 %v1168, %v1076
    %v1179 = vmul.f32 %v1168, %v1081
    %v1180 = vmul.f32 %v1168, %v1084
    %v1181 = vmul.f32 %v1168, %v1089
    %v1182 = vmul.f32 %v1168, %v1092
    %v1183 = vmul.f32 %v1168, %v1097
    %v1184 = vmul.f32 %v1168, %v1100
    %v1185 = vmul.f32 %v1168, %v1105
    %v1186 = vmul.f32 %v1168, %v1108
    %v1187 = vmul.f32 %v1168, %v1113
    %v1188 = vmul.f32 %v1168, %v1116
    %v1189 = vmul.f32 %v1168, %v1121
    %v1190 = vmul.f32 %v1168, %v1124
    %v1191 = vmul.f32 %v1168, %v1129
    %v1192 = vmul.f32 %v1168, %v1132
    %v1193 = vmul.f32 %v1168, %v1137
    %v1194 = vmul.f32 %v1168, %v1140
    %v1195 = vmul.f32 %v1168, %v1145
    %v1196 = vmul.f32 %v1168, %v1148
    %v1197 = vmul.f32 %v1168, %v1153
    %v1198 = vmul.f32 %v1168, %v1156
    %v1199 = vmul.f32 %v1168, %v1161
    %v1200 = vmul.f32 %v1168, %v1164
    %v1201 = vadd.f32 %v888, %v1169
    %v1202 = vadd.f32 %v889, %v1170
    %v1203 = vadd.f32 %v890, %v1171
    %v1204 = vadd.f32 %v891, %v1172
    %v1205 = vadd.f32 %v892, %v1173
    %v1206 = vadd.f32 %v893, %v1174
    %v1207 = vadd.f32 %v894, %v1175
    %v1208 = vadd.f32 %v895, %v1176
    %v1209 = vadd.f32 %v896, %v1177
    %v1210 = vadd.f32 %v897, %v1178
    %v1211 = vadd.f32 %v898, %v1179
    %v1212 = vadd.f32 %v899, %v1180
    %v1213 = vadd.f32 %v900, %v1181
    %v1214 = vadd.f32 %v901, %v1182
    %v1215 = vadd.f32 %v902, %v1183
    %v1216 = vadd.f32 %v903, %v1184
    %v1217 = vadd.f32 %v904, %v1185
    %v1218 = vadd.f32 %v905, %v1186
    %v1219 = vadd.f32 %v906, %v1187
    %v1220 = vadd.f32 %v907, %v1188
    %v1221 = vadd.f32 %v908, %v1189
    %v1222 = vadd.f32 %v909, %v1190
    %v1223 = vadd.f32 %v910, %v1191
    %v1224 = vadd.f32 %v911, %v1192
    %v1225 = vadd.f32 %v912, %v1193
    %v1226 = vadd.f32 %v913, %v1194
    %v1227 = vadd.f32 %v914, %v1195
    %v1228 = vadd.f32 %v915, %v1196
    %v1229 = vadd.f32 %v916, %v1197
    %v1230 = vadd.f32 %v917, %v1198
    %v1231 = vadd.f32 %v918, %v1199
    %v1232 = vadd.f32 %v919, %v1200
    %v1233 = vmax.f32 %v1201, 0.0
    %v1234 = vmax.f32 %v1202, 0.0
    %v1235 = vmax.f32 %v1203, 0.0
    %v1236 = vmax.f32 %v1204, 0.0
    %v1237 = vmax.f32 %v1205, 0.0
    %v1238 = vmax.f32 %v1206, 0.0
    %v1239 = vmax.f32 %v1207, 0.0
    %v1240 = vmax.f32 %v1208, 0.0
    %v1241 = vmax.f32 %v1209, 0.0
    %v1242 = vmax.f32 %v1210, 0.0
    %v1243 = vmax.f32 %v1211, 0.0
    %v1244 = vmax.f32 %v1212, 0.0
    %v1245 = vmax.f32 %v1213, 0.0
    %v1246 = vmax.f32 %v1214, 0.0
    %v1247 = vmax.f32 %v1215, 0.0
    %v1248 = vmax.f32 %v1216, 0.0
    %v1249 = vmax.f32 %v1217, 0.0
    %v1250 = vmax.f32 %v1218, 0.0
    %v1251 = vmax.f32 %v1219, 0.0
    %v1252 = vmax.f32 %v1220, 0.0
    %v1253 = vmax.f32 %v1221, 0.0
    %v1254 = vmax.f32 %v1222, 0.0
    %v1255 = vmax.f32 %v1223, 0.0
    %v1256 = vmax.f32 %v1224, 0.0
    %v1257 = vmax.f32 %v1225, 0.0
    %v1258 = vmax.f32 %v1226, 0.0
    %v1259 = vmax.f32 %v1227, 0.0
    %v1260 = vmax.f32 %v1228, 0.0
    %v1261 = vmax.f32 %v1229, 0.0
    %v1262 = vmax.f32 %v1230, 0.0
    %v1263 = vmax.f32 %v1231, 0.0
    %v1264 = vmax.f32 %v1232, 0.0
    %1265 = vst [vmem:[#allocation2] sm:$0xff] %v1233
    %1266 = vst [vmem:[#allocation2 + $0x8] sm:$0xff] %v1234
    %1267 = vst [vmem:[#allocation2 + $0x10] sm:$0xff] %v1235
    %1268 = vst [vmem:[#allocation2 + $0x18] sm:$0xff] %v1236
    %1269 = vst [vmem:[#allocation2 + $0x20] sm:$0xff] %v1237
    %1270 = vst [vmem:[#allocation2 + $0x28] sm:$0xff] %v1238
    %1271 = vst [vmem:[#allocation2 + $0x30] sm:$0xff] %v1239
    %1272 = vst [vmem:[#allocation2 + $0x38] sm:$0xff] %v1240
    %1273 = vst [vmem:[#allocation2 + $0x40] sm:$0xff] %v1241
    %1274 = vst [vmem:[#allocation2 + $0x48] sm:$0xff] %v1242
    %1275 = vst [vmem:[#allocation2 + $0x50] sm:$0xff] %v1243
    %1276 = vst [vmem:[#allocation2 + $0x58] sm:$0xff] %v1244
    %1277 = vst [vmem:[#allocation2 + $0x60] sm:$0xff] %v1245
    %1278 = vst [vmem:[#allocation2 + $0x68] sm:$0xff] %v1246
    %1279 = vst [vmem:[#allocation2 + $0x70] sm:$0xff] %v1247
    %1280 = vst [vmem:[#allocation2 + $0x78] sm:$0xff] %v1248
    %1281 = vst [vmem:[#allocation2 + $0x80] sm:$0xff] %v1249
    %1282 = vst [vmem:[#allocation2 + $0x88] sm:$0xff] %v1250
    %1283 = vst [vmem:[#allocation2 + $0x90] sm:$0xff] %v1251
    %1284 = vst [vmem:[#allocation2 + $0x98] sm:$0xff] %v1252
    %1285 = vst [vmem:[#allocation2 + $0xa0] sm:$0xff] %v1253
    %1286 = vst [vmem:[#allocation2 + $0xa8] sm:$0xff] %v1254
    %1287 = vst [vmem:[#allocation2 + $0xb0] sm:$0xff] %v1255
    %1288 = vst [vmem:[#allocation2 + $0xb8] sm:$0xff] %v1256
    %1289 = vst [vmem:[#allocation2 + $0xc0] sm:$0xff] %v1257
    %1290 = vst [vmem:[#allocation2 + $0xc8] sm:$0xff] %v1258
    %1291 = vst [vmem:[#allocation2 + $0xd0] sm:$0xff] %v1259
    %1292 = vst [vmem:[#allocation2 + $0xd8] sm:$0xff] %v1260
    %1293 = vst [vmem:[#allocation2 + $0xe0] sm:$0xff] %v1261
    %1294 = vst [vmem:[#allocation2 + $0xe8] sm:$0xff] %v1262
    %1295 = vst [vmem:[#allocation2 + $0xf0] sm:$0xff] %v1263
    %1296 = vst [vmem:[#allocation2 + $0xf8] sm:$0xff] %v1264
    %v1297 = vld [vmem:[#allocation2] sm:$0xff]
    %v1298 = vld [vmem:[#allocation2 + $0x8] sm:$0xff]
    %v1299 = vld [vmem:[#allocation2 + $0x10] sm:$0xff]
    %v1300 = vld [vmem:[#allocation2 + $0x18] sm:$0xff]
    %v1301 = vld [vmem:[#allocation2 + $0x20] sm:$0xff]
    %v1302 = vld [vmem:[#allocation2 + $0x28] sm:$0xff]
    %v1303 = vld [vmem:[#allocation2 + $0x30] sm:$0xff]
    %v1304 = vld [vmem:[#allocation2 + $0x38] sm:$0xff]
    %v1305 = vld [vmem:[#allocation2 + $0x40] sm:$0xff]
    %v1306 = vld [vmem:[#allocation2 + $0x48] sm:$0xff]
    %v1307 = vld [vmem:[#allocation2 + $0x50] sm:$0xff]
    %v1308 = vld [vmem:[#allocation2 + $0x58] sm:$0xff]
    %v1309 = vld [vmem:[#allocation2 + $0x60] sm:$0xff]
    %v1310 = vld [vmem:[#allocation2 + $0x68] sm:$0xff]
    %v1311 = vld [vmem:[#allocation2 + $0x70] sm:$0xff]
    %v1312 = vld [vmem:[#allocation2 + $0x78] sm:$0xff]
    %v1313 = vld [vmem:[#allocation2 + $0x80] sm:$0xff]
    %v1314 = vld [vmem:[#allocation2 + $0x88] sm:$0xff]
    %v1315 = vld [vmem:[#allocation2 + $0x90] sm:$0xff]
    %v1316 = vld [vmem:[#allocation2 + $0x98] sm:$0xff]
    %v1317 = vld [vmem:[#allocation2 + $0xa0] sm:$0xff]
    %v1318 = vld [vmem:[#allocation2 + $0xa8] sm:$0xff]
    %v1319 = vld [vmem:[#allocation2 + $0xb0] sm:$0xff]
    %v1320 = vld [vmem:[#allocation2 + $0xb8] sm:$0xff]
    %v1321 = vld [vmem:[#allocation2 + $0xc0] sm:$0xff]
    %v1322 = vld [vmem:[#allocation2 + $0xc8] sm:$0xff]
    %v1323 = vld [vmem:[#allocation2 + $0xd0] sm:$0xff]
    %v1324 = vld [vmem:[#allocation2 + $0xd8] sm:$0xff]
    %v1325 = vld [vmem:[#allocation2 + $0xe0] sm:$0xff]
    %v1326 = vld [vmem:[#allocation2 + $0xe8] sm:$0xff]
    %v1327 = vld [vmem:[#allocation2 + $0xf0] sm:$0xff]
    %v1328 = vld [vmem:[#allocation2 + $0xf8] sm:$0xff]
    %v1329 = vpack.c.bf16 %v1298, %v1297
    %v1330 = vpack.c.bf16 %v1300, %v1299
    %v1331 = vpack.c.bf16 %v1302, %v1301
    %v1332 = vpack.c.bf16 %v1304, %v1303
    %v1333 = vpack.c.bf16 %v1306, %v1305
    %v1334 = vpack.c.bf16 %v1308, %v1307
    %v1335 = vpack.c.bf16 %v1310, %v1309
    %v1336 = vpack.c.bf16 %v1312, %v1311
    %v1337 = vpack.c.bf16 %v1314, %v1313
    %v1338 = vpack.c.bf16 %v1316, %v1315
    %v1339 = vpack.c.bf16 %v1318, %v1317
    %v1340 = vpack.c.bf16 %v1320, %v1319
    %v1341 = vpack.c.bf16 %v1322, %v1321
    %v1342 = vpack.c.bf16 %v1324, %v1323
    %v1343 = vpack.c.bf16 %v1326, %v1325
    %v1344 = vpack.c.bf16 %v1328, %v1327
    %s1345 = scalar_lea.vmem [#allocation11], 128
    %v1346 = vld [vmem:[%s1345] sm:$0xf]
    %v1347 = vld [vmem:[%s1345 + $0x4] sm:$0xf]
    %v1348 = vld [vmem:[%s1345 + $0x8] sm:$0xf]
    %v1349 = vld [vmem:[%s1345 + $0xc] sm:$0xf]
    %v1350 = vld [vmem:[%s1345 + $0x10] sm:$0xf]
    %v1351 = vld [vmem:[%s1345 + $0x14] sm:$0xf]
    %v1352 = vld [vmem:[%s1345 + $0x18] sm:$0xf]
    %v1353 = vld [vmem:[%s1345 + $0x1c] sm:$0xf]
    %v1354 = vld [vmem:[%s1345 + $0x20] sm:$0xf]
    %v1355 = vld [vmem:[%s1345 + $0x24] sm:$0xf]
    %v1356 = vld [vmem:[%s1345 + $0x28] sm:$0xf]
    %v1357 = vld [vmem:[%s1345 + $0x2c] sm:$0xf]
    %v1358 = vld [vmem:[%s1345 + $0x30] sm:$0xf]
    %v1359 = vld [vmem:[%s1345 + $0x34] sm:$0xf]
    %v1360 = vld [vmem:[%s1345 + $0x38] sm:$0xf]
    %v1361 = vld [vmem:[%s1345 + $0x3c] sm:$0xf]
    %v1362 = vld [vmem:[#allocation13 + $0x2] sm:$0x1]
    %v1363 = vlaneseq
    %v1364 = vshrl.u32 %v1363, 7
    %v1365 = vsub.s32 0, %v1364
    %v1366 = vrot.slane %v1362, %v1365
    %v1383 = vunpack.c.l.b16 %v1346
    %v1384 = vunpack.c.l.b16 %v1347
    %v1385 = vunpack.c.l.b16 %v1348
    %v1386 = vunpack.c.l.b16 %v1349
    %v1387 = vunpack.c.l.b16 %v1350
    %v1388 = vunpack.c.l.b16 %v1351
    %v1389 = vunpack.c.l.b16 %v1352
    %v1390 = vunpack.c.l.b16 %v1353
    %v1391 = vunpack.c.l.b16 %v1354
    %v1392 = vunpack.c.l.b16 %v1355
    %v1393 = vunpack.c.l.b16 %v1356
    %v1394 = vunpack.c.l.b16 %v1357
    %v1395 = vunpack.c.l.b16 %v1358
    %v1396 = vunpack.c.l.b16 %v1359
    %v1397 = vunpack.c.l.b16 %v1360
    %v1398 = vunpack.c.l.b16 %v1361
    %v1399 = vpack.c.b16 %v1384, %v1383
    %v1400 = vpack.c.b16 %v1386, %v1385
    %v1401 = vpack.c.b16 %v1388, %v1387
    %v1402 = vpack.c.b16 %v1390, %v1389
    %v1403 = vpack.c.b16 %v1392, %v1391
    %v1404 = vpack.c.b16 %v1394, %v1393
    %v1405 = vpack.c.b16 %v1396, %v1395
    %v1406 = vpack.c.b16 %v1398, %v1397
    %1415 = vmatprep.subr.bf16.mxu0 0
    %1416 = vmatpush1.bf16.msra.mxu0 %v1399
    %1417 = vmatprep.subr.bf16.mxu0 0
    %1418 = vmatpush1.bf16.msra.mxu0 %v1400
    %1419 = vmatprep.subr.bf16.mxu0 0
    %1420 = vmatpush1.bf16.msra.mxu0 %v1401
    %1421 = vmatprep.subr.bf16.mxu0 0
    %1422 = vmatpush1.bf16.msra.mxu0 %v1402
    %1423 = vmatprep.subr.bf16.mxu0 0
    %1424 = vmatpush1.bf16.msra.mxu0 %v1403
    %1425 = vmatprep.subr.bf16.mxu0 0
    %1426 = vmatpush1.bf16.msra.mxu0 %v1404
    %1427 = vmatprep.subr.bf16.mxu0 0
    %1428 = vmatpush1.bf16.msra.mxu0 %v1405
    %1429 = vmatprep.subr.bf16.mxu0 0
    %1430 = vmatpush1.bf16.msra.mxu0 %v1406
    %1431 = vmatprep.subr.bf16.mxu0 0
    %1432 = vmatpush1.bf16.msra.mxu0 0
    %1433 = vmatprep.subr.bf16.mxu0 0
    %1434 = vmatpush1.bf16.msra.mxu0 0
    %1435 = vmatprep.subr.bf16.mxu0 0
    %1436 = vmatpush1.bf16.msra.mxu0 0
    %1437 = vmatprep.subr.bf16.mxu0 0
    %1438 = vmatpush1.bf16.msra.mxu0 0
    %1439 = vmatprep.subr.bf16.mxu0 0
    %1440 = vmatpush1.bf16.msra.mxu0 0
    %1441 = vmatprep.subr.bf16.mxu0 0
    %1442 = vmatpush1.bf16.msra.mxu0 0
    %1443 = vmatprep.subr.bf16.mxu0 0
    %1444 = vmatpush1.bf16.msra.mxu0 0
    %1445 = vmatprep.subr.bf16.mxu0 0
    %1446 = vmatpush1.bf16.msra.mxu0 0
    %1447 = vmatprep.mubr.bf16.mxu0 0
    %1448 = vmatmul.mubr.bf16.gmra.mrb[0].mxu0 %v1329
    %v1449 = vpop.f32.mrb[0].mxu0
    %v1450 = vadd.f32 %v1366, %v1449
    %v1451 = vpop.f32.mrb[0].mxu0
    %v1452 = vpop.f32.mrb[0].mxu0
    %v1453 = vadd.f32 %v1366, %v1452
    %v1454 = vpop.f32.mrb[0].mxu0
    %1455 = vmatprep.mubr.bf16.mxu0 0
    %1456 = vmatmul.mubr.bf16.gmra.mrb[0].mxu0 %v1330
    %v1457 = vpop.f32.mrb[0].mxu0
    %v1458 = vadd.f32 %v1366, %v1457
    %v1459 = vpop.f32.mrb[0].mxu0
    %v1460 = vpop.f32.mrb[0].mxu0
    %v1461 = vadd.f32 %v1366, %v1460
    %v1462 = vpop.f32.mrb[0].mxu0
    %1463 = vmatprep.mubr.bf16.mxu0 0
    %1464 = vmatmul.mubr.bf16.gmra.mrb[0].mxu0 %v1331
    %v1465 = vpop.f32.mrb[0].mxu0
    %v1466 = vadd.f32 %v1366, %v1465
    %v1467 = vpop.f32.mrb[0].mxu0
    %v1468 = vpop.f32.mrb[0].mxu0
    %v1469 = vadd.f32 %v1366, %v1468
    %v1470 = vpop.f32.mrb[0].mxu0
    %1471 = vmatprep.mubr.bf16.mxu0 0
    %1472 = vmatmul.mubr.bf16.gmra.mrb[0].mxu0 %v1332
    %v1473 = vpop.f32.mrb[0].mxu0
    %v1474 = vadd.f32 %v1366, %v1473
    %v1475 = vpop.f32.mrb[0].mxu0
    %v1476 = vpop.f32.mrb[0].mxu0
    %v1477 = vadd.f32 %v1366, %v1476
    %v1478 = vpop.f32.mrb[0].mxu0
    %1479 = vmatprep.mubr.bf16.mxu0 0
    %1480 = vmatmul.mubr.bf16.gmra.mrb[0].mxu0 %v1333
    %v1481 = vpop.f32.mrb[0].mxu0
    %v1482 = vadd.f32 %v1366, %v1481
    %v1483 = vpop.f32.mrb[0].mxu0
    %v1484 = vpop.f32.mrb[0].mxu0
    %v1485 = vadd.f32 %v1366, %v1484
    %v1486 = vpop.f32.mrb[0].mxu0
    %1487 = vmatprep.mubr.bf16.mxu0 0
    %1488 = vmatmul.mubr.bf16.gmra.mrb[0].mxu0 %v1334
    %v1489 = vpop.f32.mrb[0].mxu0
    %v1490 = vadd.f32 %v1366, %v1489
    %v1491 = vpop.f32.mrb[0].mxu0
    %v1492 = vpop.f32.mrb[0].mxu0
    %v1493 = vadd.f32 %v1366, %v1492
    %v1494 = vpop.f32.mrb[0].mxu0
    %1495 = vmatprep.mubr.bf16.mxu0 0
    %1496 = vmatmul.mubr.bf16.gmra.mrb[0].mxu0 %v1335
    %v1497 = vpop.f32.mrb[0].mxu0
    %v1498 = vadd.f32 %v1366, %v1497
    %v1499 = vpop.f32.mrb[0].mxu0
    %v1500 = vpop.f32.mrb[0].mxu0
    %v1501 = vadd.f32 %v1366, %v1500
    %v1502 = vpop.f32.mrb[0].mxu0
    %1503 = vmatprep.mubr.bf16.mxu0 0
    %1504 = vmatmul.mubr.bf16.gmra.mrb[0].mxu0 %v1336
    %v1505 = vpop.f32.mrb[0].mxu0
    %v1506 = vadd.f32 %v1366, %v1505
    %v1507 = vpop.f32.mrb[0].mxu0
    %v1508 = vpop.f32.mrb[0].mxu0
    %v1509 = vadd.f32 %v1366, %v1508
    %v1510 = vpop.f32.mrb[0].mxu0
    %1511 = vmatprep.mubr.bf16.mxu0 0
    %1512 = vmatmul.mubr.bf16.gmra.mrb[0].mxu0 %v1337
    %v1513 = vpop.f32.mrb[0].mxu0
    %v1514 = vadd.f32 %v1366, %v1513
    %v1515 = vpop.f32.mrb[0].mxu0
    %v1516 = vpop.f32.mrb[0].mxu0
    %v1517 = vadd.f32 %v1366, %v1516
    %v1518 = vpop.f32.mrb[0].mxu0
    %1519 = vmatprep.mubr.bf16.mxu0 0
    %1520 = vmatmul.mubr.bf16.gmra.mrb[0].mxu0 %v1338
    %v1521 = vpop.f32.mrb[0].mxu0
    %v1522 = vadd.f32 %v1366, %v1521
    %v1523 = vpop.f32.mrb[0].mxu0
    %v1524 = vpop.f32.mrb[0].mxu0
    %v1525 = vadd.f32 %v1366, %v1524
    %v1526 = vpop.f32.mrb[0].mxu0
    %1527 = vmatprep.mubr.bf16.mxu0 0
    %1528 = vmatmul.mubr.bf16.gmra.mrb[0].mxu0 %v1339
    %v1529 = vpop.f32.mrb[0].mxu0
    %v1530 = vadd.f32 %v1366, %v1529
    %v1531 = vpop.f32.mrb[0].mxu0
    %v1532 = vpop.f32.mrb[0].mxu0
    %v1533 = vadd.f32 %v1366, %v1532
    %v1534 = vpop.f32.mrb[0].mxu0
    %1535 = vmatprep.mubr.bf16.mxu0 0
    %1536 = vmatmul.mubr.bf16.gmra.mrb[0].mxu0 %v1340
    %v1537 = vpop.f32.mrb[0].mxu0
    %v1538 = vadd.f32 %v1366, %v1537
    %v1539 = vpop.f32.mrb[0].mxu0
    %v1540 = vpop.f32.mrb[0].mxu0
    %v1541 = vadd.f32 %v1366, %v1540
    %v1542 = vpop.f32.mrb[0].mxu0
    %1543 = vmatprep.mubr.bf16.mxu0 0
    %1544 = vmatmul.mubr.bf16.gmra.mrb[0].mxu0 %v1341
    %v1545 = vpop.f32.mrb[0].mxu0
    %v1546 = vadd.f32 %v1366, %v1545
    %v1547 = vpop.f32.mrb[0].mxu0
    %v1548 = vpop.f32.mrb[0].mxu0
    %v1549 = vadd.f32 %v1366, %v1548
    %v1550 = vpop.f32.mrb[0].mxu0
    %1551 = vmatprep.mubr.bf16.mxu0 0
    %1552 = vmatmul.mubr.bf16.gmra.mrb[0].mxu0 %v1342
    %v1553 = vpop.f32.mrb[0].mxu0
    %v1554 = vadd.f32 %v1366, %v1553
    %v1555 = vpop.f32.mrb[0].mxu0
    %v1556 = vpop.f32.mrb[0].mxu0
    %v1557 = vadd.f32 %v1366, %v1556
    %v1558 = vpop.f32.mrb[0].mxu0
    %1559 = vmatprep.mubr.bf16.mxu0 0
    %1560 = vmatmul.mubr.bf16.gmra.mrb[0].mxu0 %v1343
    %v1561 = vpop.f32.mrb[0].mxu0
    %v1562 = vadd.f32 %v1366, %v1561
    %v1563 = vpop.f32.mrb[0].mxu0
    %v1564 = vpop.f32.mrb[0].mxu0
    %v1565 = vadd.f32 %v1366, %v1564
    %v1566 = vpop.f32.mrb[0].mxu0
    %1567 = vmatprep.mubr.bf16.mxu0 0
    %1568 = vmatmul.mubr.bf16.gmra.mrb[0].mxu0 %v1344
    %v1569 = vpop.f32.mrb[0].mxu0
    %v1570 = vadd.f32 %v1366, %v1569
    %v1571 = vpop.f32.mrb[0].mxu0
    %v1572 = vpop.f32.mrb[0].mxu0
    %v1573 = vadd.f32 %v1366, %v1572
    %v1574 = vpop.f32.mrb[0].mxu0
    %1575 = vdwg.mxu0
    %s1576 = sld [smem:[#allocation14 + $0x2]]
    %v1577 = vstv %s1576
    %v1578 = vmul.f32 %v1577, %v1450
    %v1579 = vmul.f32 %v1577, %v1453
    %v1580 = vmul.f32 %v1577, %v1458
    %v1581 = vmul.f32 %v1577, %v1461
    %v1582 = vmul.f32 %v1577, %v1466
    %v1583 = vmul.f32 %v1577, %v1469
    %v1584 = vmul.f32 %v1577, %v1474
    %v1585 = vmul.f32 %v1577, %v1477
    %v1586 = vmul.f32 %v1577, %v1482
    %v1587 = vmul.f32 %v1577, %v1485
    %v1588 = vmul.f32 %v1577, %v1490
    %v1589 = vmul.f32 %v1577, %v1493
    %v1590 = vmul.f32 %v1577, %v1498
    %v1591 = vmul.f32 %v1577, %v1501
    %v1592 = vmul.f32 %v1577, %v1506
    %v1593 = vmul.f32 %v1577, %v1509
    %v1594 = vmul.f32 %v1577, %v1514
    %v1595 = vmul.f32 %v1577, %v1517
    %v1596 = vmul.f32 %v1577, %v1522
    %v1597 = vmul.f32 %v1577, %v1525
    %v1598 = vmul.f32 %v1577, %v1530
    %v1599 = vmul.f32 %v1577, %v1533
    %v1600 = vmul.f32 %v1577, %v1538
    %v1601 = vmul.f32 %v1577, %v1541
    %v1602 = vmul.f32 %v1577, %v1546
    %v1603 = vmul.f32 %v1577, %v1549
    %v1604 = vmul.f32 %v1577, %v1554
    %v1605 = vmul.f32 %v1577, %v1557
    %v1606 = vmul.f32 %v1577, %v1562
    %v1607 = vmul.f32 %v1577, %v1565
    %v1608 = vmul.f32 %v1577, %v1570
    %v1609 = vmul.f32 %v1577, %v1573
    %v1610 = vadd.f32 %v1297, %v1578
    %v1611 = vadd.f32 %v1298, %v1579
    %v1612 = vadd.f32 %v1299, %v1580
    %v1613 = vadd.f32 %v1300, %v1581
    %v1614 = vadd.f32 %v1301, %v1582
    %v1615 = vadd.f32 %v1302, %v1583
    %v1616 = vadd.f32 %v1303, %v1584
    %v1617 = vadd.f32 %v1304, %v1585
    %v1618 = vadd.f32 %v1305, %v1586
    %v1619 = vadd.f32 %v1306, %v1587
    %v1620 = vadd.f32 %v1307, %v1588
    %v1621 = vadd.f32 %v1308, %v1589
    %v1622 = vadd.f32 %v1309, %v1590
    %v1623 = vadd.f32 %v1310, %v1591
    %v1624 = vadd.f32 %v1311, %v1592
    %v1625 = vadd.f32 %v1312, %v1593
    %v1626 = vadd.f32 %v1313, %v1594
    %v1627 = vadd.f32 %v1314, %v1595
    %v1628 = vadd.f32 %v1315, %v1596
    %v1629 = vadd.f32 %v1316, %v1597
    %v1630 = vadd.f32 %v1317, %v1598
    %v1631 = vadd.f32 %v1318, %v1599
    %v1632 = vadd.f32 %v1319, %v1600
    %v1633 = vadd.f32 %v1320, %v1601
    %v1634 = vadd.f32 %v1321, %v1602
    %v1635 = vadd.f32 %v1322, %v1603
    %v1636 = vadd.f32 %v1323, %v1604
    %v1637 = vadd.f32 %v1324, %v1605
    %v1638 = vadd.f32 %v1325, %v1606
    %v1639 = vadd.f32 %v1326, %v1607
    %v1640 = vadd.f32 %v1327, %v1608
    %v1641 = vadd.f32 %v1328, %v1609
    %v1642 = vmax.f32 %v1610, 0.0
    %v1643 = vmax.f32 %v1611, 0.0
    %v1644 = vmax.f32 %v1612, 0.0
    %v1645 = vmax.f32 %v1613, 0.0
    %v1646 = vmax.f32 %v1614, 0.0
    %v1647 = vmax.f32 %v1615, 0.0
    %v1648 = vmax.f32 %v1616, 0.0
    %v1649 = vmax.f32 %v1617, 0.0
    %v1650 = vmax.f32 %v1618, 0.0
    %v1651 = vmax.f32 %v1619, 0.0
    %v1652 = vmax.f32 %v1620, 0.0
    %v1653 = vmax.f32 %v1621, 0.0
    %v1654 = vmax.f32 %v1622, 0.0
    %v1655 = vmax.f32 %v1623, 0.0
    %v1656 = vmax.f32 %v1624, 0.0
    %v1657 = vmax.f32 %v1625, 0.0
    %v1658 = vmax.f32 %v1626, 0.0
    %v1659 = vmax.f32 %v1627, 0.0
    %v1660 = vmax.f32 %v1628, 0.0
    %v1661 = vmax.f32 %v1629, 0.0
    %v1662 = vmax.f32 %v1630, 0.0
    %v1663 = vmax.f32 %v1631, 0.0
    %v1664 = vmax.f32 %v1632, 0.0
    %v1665 = vmax.f32 %v1633, 0.0
    %v1666 = vmax.f32 %v1634, 0.0
    %v1667 = vmax.f32 %v1635, 0.0
    %v1668 = vmax.f32 %v1636, 0.0
    %v1669 = vmax.f32 %v1637, 0.0
    %v1670 = vmax.f32 %v1638, 0.0
    %v1671 = vmax.f32 %v1639, 0.0
    %v1672 = vmax.f32 %v1640, 0.0
    %v1673 = vmax.f32 %v1641, 0.0
    %1674 = vst [vmem:[#allocation2] sm:$0xff] %v1642
    %1675 = vst [vmem:[#allocation2 + $0x8] sm:$0xff] %v1643
    %1676 = vst [vmem:[#allocation2 + $0x10] sm:$0xff] %v1644
    %1677 = vst [vmem:[#allocation2 + $0x18] sm:$0xff] %v1645
    %1678 = vst [vmem:[#allocation2 + $0x20] sm:$0xff] %v1646
    %1679 = vst [vmem:[#allocation2 + $0x28] sm:$0xff] %v1647
    %1680 = vst [vmem:[#allocation2 + $0x30] sm:$0xff] %v1648
    %1681 = vst [vmem:[#allocation2 + $0x38] sm:$0xff] %v1649
    %1682 = vst [vmem:[#allocation2 + $0x40] sm:$0xff] %v1650
    %1683 = vst [vmem:[#allocation2 + $0x48] sm:$0xff] %v1651
    %1684 = vst [vmem:[#allocation2 + $0x50] sm:$0xff] %v1652
    %1685 = vst [vmem:[#allocation2 + $0x58] sm:$0xff] %v1653
    %1686 = vst [vmem:[#allocation2 + $0x60] sm:$0xff] %v1654
    %1687 = vst [vmem:[#allocation2 + $0x68] sm:$0xff] %v1655
    %1688 = vst [vmem:[#allocation2 + $0x70] sm:$0xff] %v1656
    %1689 = vst [vmem:[#allocation2 + $0x78] sm:$0xff] %v1657
    %1690 = vst [vmem:[#allocation2 + $0x80] sm:$0xff] %v1658
    %1691 = vst [vmem:[#allocation2 + $0x88] sm:$0xff] %v1659
    %1692 = vst [vmem:[#allocation2 + $0x90] sm:$0xff] %v1660
    %1693 = vst [vmem:[#allocation2 + $0x98] sm:$0xff] %v1661
    %1694 = vst [vmem:[#allocation2 + $0xa0] sm:$0xff] %v1662
    %1695 = vst [vmem:[#allocation2 + $0xa8] sm:$0xff] %v1663
    %1696 = vst [vmem:[#allocation2 + $0xb0] sm:$0xff] %v1664
    %1697 = vst [vmem:[#allocation2 + $0xb8] sm:$0xff] %v1665
    %1698 = vst [vmem:[#allocation2 + $0xc0] sm:$0xff] %v1666
    %1699 = vst [vmem:[#allocation2 + $0xc8] sm:$0xff] %v1667
    %1700 = vst [vmem:[#allocation2 + $0xd0] sm:$0xff] %v1668
    %1701 = vst [vmem:[#allocation2 + $0xd8] sm:$0xff] %v1669
    %1702 = vst [vmem:[#allocation2 + $0xe0] sm:$0xff] %v1670
    %1703 = vst [vmem:[#allocation2 + $0xe8] sm:$0xff] %v1671
    %1704 = vst [vmem:[#allocation2 + $0xf0] sm:$0xff] %v1672
    %1705 = vst [vmem:[#allocation2 + $0xf8] sm:$0xff] %v1673
    %v1706 = vld [vmem:[#allocation2] sm:$0xff]
    %v1707 = vld [vmem:[#allocation2 + $0x8] sm:$0xff]
    %v1708 = vld [vmem:[#allocation2 + $0x10] sm:$0xff]
    %v1709 = vld [vmem:[#allocation2 + $0x18] sm:$0xff]
    %v1710 = vld [vmem:[#allocation2 + $0x20] sm:$0xff]
    %v1711 = vld [vmem:[#allocation2 + $0x28] sm:$0xff]
    %v1712 = vld [vmem:[#allocation2 + $0x30] sm:$0xff]
    %v1713 = vld [vmem:[#allocation2 + $0x38] sm:$0xff]
    %v1714 = vld [vmem:[#allocation2 + $0x40] sm:$0xff]
    %v1715 = vld [vmem:[#allocation2 + $0x48] sm:$0xff]
    %v1716 = vld [vmem:[#allocation2 + $0x50] sm:$0xff]
    %v1717 = vld [vmem:[#allocation2 + $0x58] sm:$0xff]
    %v1718 = vld [vmem:[#allocation2 + $0x60] sm:$0xff]
    %v1719 = vld [vmem:[#allocation2 + $0x68] sm:$0xff]
    %v1720 = vld [vmem:[#allocation2 + $0x70] sm:$0xff]
    %v1721 = vld [vmem:[#allocation2 + $0x78] sm:$0xff]
    %v1722 = vld [vmem:[#allocation2 + $0x80] sm:$0xff]
    %v1723 = vld [vmem:[#allocation2 + $0x88] sm:$0xff]
    %v1724 = vld [vmem:[#allocation2 + $0x90] sm:$0xff]
    %v1725 = vld [vmem:[#allocation2 + $0x98] sm:$0xff]
    %v1726 = vld [vmem:[#allocation2 + $0xa0] sm:$0xff]
    %v1727 = vld [vmem:[#allocation2 + $0xa8] sm:$0xff]
    %v1728 = vld [vmem:[#allocation2 + $0xb0] sm:$0xff]
    %v1729 = vld [vmem:[#allocation2 + $0xb8] sm:$0xff]
    %v1730 = vld [vmem:[#allocation2 + $0xc0] sm:$0xff]
    %v1731 = vld [vmem:[#allocation2 + $0xc8] sm:$0xff]
    %v1732 = vld [vmem:[#allocation2 + $0xd0] sm:$0xff]
    %v1733 = vld [vmem:[#allocation2 + $0xd8] sm:$0xff]
    %v1734 = vld [vmem:[#allocation2 + $0xe0] sm:$0xff]
    %v1735 = vld [vmem:[#allocation2 + $0xe8] sm:$0xff]
    %v1736 = vld [vmem:[#allocation2 + $0xf0] sm:$0xff]
    %v1737 = vld [vmem:[#allocation2 + $0xf8] sm:$0xff]
    %v1738 = vld [vmem:[#allocation15] sm:$0x1]
    %v1740 = vlaneseq
    %v1741 = vshrl.u32 %v1740, 7
    %v1742 = vsub.s32 0, %v1741
    %v1743 = vrot.slane %v1738, %v1742
    %v1745 = vmul.f32 %v1706, %v1743
    %v1746 = vmul.f32 %v1707, %v1743
    %v1747 = vmul.f32 %v1708, %v1743
    %v1748 = vmul.f32 %v1709, %v1743
    %v1749 = vmul.f32 %v1710, %v1743
    %v1750 = vmul.f32 %v1711, %v1743
    %v1751 = vmul.f32 %v1712, %v1743
    %v1752 = vmul.f32 %v1713, %v1743
    %v1753 = vmul.f32 %v1714, %v1743
    %v1754 = vmul.f32 %v1715, %v1743
    %v1755 = vmul.f32 %v1716, %v1743
    %v1756 = vmul.f32 %v1717, %v1743
    %v1757 = vmul.f32 %v1718, %v1743
    %v1758 = vmul.f32 %v1719, %v1743
    %v1759 = vmul.f32 %v1720, %v1743
    %v1760 = vmul.f32 %v1721, %v1743
    %v1761 = vmul.f32 %v1722, %v1743
    %v1762 = vmul.f32 %v1723, %v1743
    %v1763 = vmul.f32 %v1724, %v1743
    %v1764 = vmul.f32 %v1725, %v1743
    %v1765 = vmul.f32 %v1726, %v1743
    %v1766 = vmul.f32 %v1727, %v1743
    %v1767 = vmul.f32 %v1728, %v1743
    %v1768 = vmul.f32 %v1729, %v1743
    %v1769 = vmul.f32 %v1730, %v1743
    %v1770 = vmul.f32 %v1731, %v1743
    %v1771 = vmul.f32 %v1732, %v1743
    %v1772 = vmul.f32 %v1733, %v1743
    %v1773 = vmul.f32 %v1734, %v1743
    %v1774 = vmul.f32 %v1735, %v1743
    %v1775 = vmul.f32 %v1736, %v1743
    %v1776 = vmul.f32 %v1737, %v1743
    %1777 = vadd.xlane.f32.xlu0 %v1745
    %v1778 = vpop.xlane.xlu0 %1777
    %1779 = vadd.xlane.f32.xlu0 %v1746
    %v1780 = vpop.xlane.xlu0 %1779
    %1781 = vadd.xlane.f32.xlu0 %v1747
    %v1782 = vpop.xlane.xlu0 %1781
    %1783 = vadd.xlane.f32.xlu0 %v1748
    %v1784 = vpop.xlane.xlu0 %1783
    %1785 = vadd.xlane.f32.xlu0 %v1749
    %v1786 = vpop.xlane.xlu0 %1785
    %1787 = vadd.xlane.f32.xlu0 %v1750
    %v1788 = vpop.xlane.xlu0 %1787
    %1789 = vadd.xlane.f32.xlu0 %v1751
    %v1790 = vpop.xlane.xlu0 %1789
    %1791 = vadd.xlane.f32.xlu0 %v1752
    %v1792 = vpop.xlane.xlu0 %1791
    %1793 = vadd.xlane.f32.xlu0 %v1753
    %v1794 = vpop.xlane.xlu0 %1793
    %1795 = vadd.xlane.f32.xlu0 %v1754
    %v1796 = vpop.xlane.xlu0 %1795
    %1797 = vadd.xlane.f32.xlu0 %v1755
    %v1798 = vpop.xlane.xlu0 %1797
    %1799 = vadd.xlane.f32.xlu0 %v1756
    %v1800 = vpop.xlane.xlu0 %1799
    %1801 = vadd.xlane.f32.xlu0 %v1757
    %v1802 = vpop.xlane.xlu0 %1801
    %1803 = vadd.xlane.f32.xlu0 %v1758
    %v1804 = vpop.xlane.xlu0 %1803
    %1805 = vadd.xlane.f32.xlu0 %v1759
    %v1806 = vpop.xlane.xlu0 %1805
    %1807 = vadd.xlane.f32.xlu0 %v1760
    %v1808 = vpop.xlane.xlu0 %1807
    %1809 = vadd.xlane.f32.xlu0 %v1761
    %v1810 = vpop.xlane.xlu0 %1809
    %1811 = vadd.xlane.f32.xlu0 %v1762
    %v1812 = vpop.xlane.xlu0 %1811
    %1813 = vadd.xlane.f32.xlu0 %v1763
    %v1814 = vpop.xlane.xlu0 %1813
    %1815 = vadd.xlane.f32.xlu0 %v1764
    %v1816 = vpop.xlane.xlu0 %1815
    %1817 = vadd.xlane.f32.xlu0 %v1765
    %v1818 = vpop.xlane.xlu0 %1817
    %1819 = vadd.xlane.f32.xlu0 %v1766
    %v1820 = vpop.xlane.xlu0 %1819
    %1821 = vadd.xlane.f32.xlu0 %v1767
    %v1822 = vpop.xlane.xlu0 %1821
    %1823 = vadd.xlane.f32.xlu0 %v1768
    %v1824 = vpop.xlane.xlu0 %1823
    %1825 = vadd.xlane.f32.xlu0 %v1769
    %v1826 = vpop.xlane.xlu0 %1825
    %1827 = vadd.xlane.f32.xlu0 %v1770
    %v1828 = vpop.xlane.xlu0 %1827
    %1829 = vadd.xlane.f32.xlu0 %v1771
    %v1830 = vpop.xlane.xlu0 %1829
    %1831 = vadd.xlane.f32.xlu0 %v1772
    %v1832 = vpop.xlane.xlu0 %1831
    %1833 = vadd.xlane.f32.xlu0 %v1773
    %v1834 = vpop.xlane.xlu0 %1833
    %1835 = vadd.xlane.f32.xlu0 %v1774
    %v1836 = vpop.xlane.xlu0 %1835
    %1837 = vadd.xlane.f32.xlu0 %v1775
    %v1838 = vpop.xlane.xlu0 %1837
    %1839 = vadd.xlane.f32.xlu0 %v1776
    %v1840 = vpop.xlane.xlu0 %1839
    %s1841 = sld [smem:[#allocation3]]
    %v1842 = vstv %s1841
    %v1843 = vadd.f32 %v1778, %v1842
    %v1844 = vadd.f32 %v1780, %v1842
    %v1845 = vadd.f32 %v1782, %v1842
    %v1846 = vadd.f32 %v1784, %v1842
    %v1847 = vadd.f32 %v1786, %v1842
    %v1848 = vadd.f32 %v1788, %v1842
    %v1849 = vadd.f32 %v1790, %v1842
    %v1850 = vadd.f32 %v1792, %v1842
    %v1851 = vadd.f32 %v1794, %v1842
    %v1852 = vadd.f32 %v1796, %v1842
    %v1853 = vadd.f32 %v1798, %v1842
    %v1854 = vadd.f32 %v1800, %v1842
    %v1855 = vadd.f32 %v1802, %v1842
    %v1856 = vadd.f32 %v1804, %v1842
    %v1857 = vadd.f32 %v1806, %v1842
    %v1858 = vadd.f32 %v1808, %v1842
    %v1859 = vadd.f32 %v1810, %v1842
    %v1860 = vadd.f32 %v1812, %v1842
    %v1861 = vadd.f32 %v1814, %v1842
    %v1862 = vadd.f32 %v1816, %v1842
    %v1863 = vadd.f32 %v1818, %v1842
    %v1864 = vadd.f32 %v1820, %v1842
    %v1865 = vadd.f32 %v1822, %v1842
    %v1866 = vadd.f32 %v1824, %v1842
    %v1867 = vadd.f32 %v1826, %v1842
    %v1868 = vadd.f32 %v1828, %v1842
    %v1869 = vadd.f32 %v1830, %v1842
    %v1870 = vadd.f32 %v1832, %v1842
    %v1871 = vadd.f32 %v1834, %v1842
    %v1872 = vadd.f32 %v1836, %v1842
    %v1873 = vadd.f32 %v1838, %v1842
    %v1874 = vadd.f32 %v1840, %v1842
    %1875 = vxpose.xlu0.b32.start [1/16] %v1843, 128
    %1876 = vxpose.xlu0.b32.cont [2/16] %v1844, 128
    %1877 = vxpose.xlu0.b32.cont [3/16] %v1845, 128
    %1878 = vxpose.xlu0.b32.cont [4/16] %v1846, 128
    %1879 = vxpose.xlu0.b32.cont [5/16] %v1847, 128
    %1880 = vxpose.xlu0.b32.cont [6/16] %v1848, 128
    %1881 = vxpose.xlu0.b32.cont [7/16] %v1849, 128
    %1882 = vxpose.xlu0.b32.cont [8/16] %v1850, 128
    %1883 = vxpose.xlu0.b32.cont [9/16] %v1851, 128
    %1884 = vxpose.xlu0.b32.cont [10/16] %v1852, 128
    %1885 = vxpose.xlu0.b32.cont [11/16] %v1853, 128
    %1886 = vxpose.xlu0.b32.cont [12/16] %v1854, 128
    %1887 = vxpose.xlu0.b32.cont [13/16] %v1855, 128
    %1888 = vxpose.xlu0.b32.cont [14/16] %v1856, 128
    %1889 = vxpose.xlu0.b32.cont [15/16] %v1857, 128
    %1890 = vxpose.xlu0.b32.end [16/16] %v1858, 128
    %v1891 = vpop.trf.xlu0
    %v1892 = vpop.trf.xlu0
    %v1893 = vpop.trf.xlu0
    %v1894 = vpop.trf.xlu0
    %v1895 = vpop.trf.xlu0
    %v1896 = vpop.trf.xlu0
    %v1897 = vpop.trf.xlu0
    %v1898 = vpop.trf.xlu0
    %v1899 = vpop.trf.xlu0
    %v1900 = vpop.trf.xlu0
    %v1901 = vpop.trf.xlu0
    %v1902 = vpop.trf.xlu0
    %v1903 = vpop.trf.xlu0
    %v1904 = vpop.trf.xlu0
    %v1905 = vpop.trf.xlu0
    %v1906 = vpop.trf.xlu0
    %1907 = vxpose.xlu0.b32.start [1/16] %v1859, 128
    %1908 = vxpose.xlu0.b32.cont [2/16] %v1860, 128
    %1909 = vxpose.xlu0.b32.cont [3/16] %v1861, 128
    %1910 = vxpose.xlu0.b32.cont [4/16] %v1862, 128
    %1911 = vxpose.xlu0.b32.cont [5/16] %v1863, 128
    %1912 = vxpose.xlu0.b32.cont [6/16] %v1864, 128
    %1913 = vxpose.xlu0.b32.cont [7/16] %v1865, 128
    %1914 = vxpose.xlu0.b32.cont [8/16] %v1866, 128
    %1915 = vxpose.xlu0.b32.cont [9/16] %v1867, 128
    %1916 = vxpose.xlu0.b32.cont [10/16] %v1868, 128
    %1917 = vxpose.xlu0.b32.cont [11/16] %v1869, 128
    %1918 = vxpose.xlu0.b32.cont [12/16] %v1870, 128
    %1919 = vxpose.xlu0.b32.cont [13/16] %v1871, 128
    %1920 = vxpose.xlu0.b32.cont [14/16] %v1872, 128
    %1921 = vxpose.xlu0.b32.cont [15/16] %v1873, 128
    %1922 = vxpose.xlu0.b32.end [16/16] %v1874, 128
    %v1923 = vpop.trf.xlu0
    %v1924 = vpop.trf.xlu0
    %v1925 = vpop.trf.xlu0
    %v1926 = vpop.trf.xlu0
    %v1927 = vpop.trf.xlu0
    %v1928 = vpop.trf.xlu0
    %v1929 = vpop.trf.xlu0
    %v1930 = vpop.trf.xlu0
    %v1931 = vpop.trf.xlu0
    %v1932 = vpop.trf.xlu0
    %v1933 = vpop.trf.xlu0
    %v1934 = vpop.trf.xlu0
    %v1935 = vpop.trf.xlu0
    %v1936 = vpop.trf.xlu0
    %v1937 = vpop.trf.xlu0
    %v1938 = vpop.trf.xlu0
    %v1941 = vcombine.low %v1891, %v1923
    %v1943 = vunpack.c.l.s4 1966171168
    %v1944 = vunpack.c.0.s8 %v1943
    %v1945 = vlaneseq
    %v1946 = vshrl.u32 %v1945, 7
    %v1947 = vsub.s32 %v1944, %v1946
    %v1948 = vrot.slane %v1941, %v1947
    %v1950 = vunpack.c.l.s4 1966171168
    %v1951 = vunpack.c.0.s8 %v1950
    %v1952 = vlaneseq
    %v1953 = vshrl.u32 %v1952, 7
    %v1954 = vsub.s32 %v1951, %v1953
    %v1955 = vrot.slane %v1948, %v1954
    %v1957 = vlaneseq
    %vm1958 = vcmp.ge.s32.totalorder %v1957, 0
    %vm1959 = vcmp.lt.s32.totalorder %v1957, 256
    %vm1960 = vmand %vm1958, %vm1959
    %1961 = vst.msk [vmem:[#allocation17] sm:$0x3] %vm1960, %v1955
    // Predicated region
    $region62: #{resdensenet_forward.1} parent=1 // pred_check
      _
    $region63: #{resdensenet_forward.1} parent=1 // pred_check_branch
      %1963 = sbr.rel (0) target = $region65
    $region64: #{resdensenet_forward.1} parent=1 // pred_region
      %s1965 = ssub.s32 32, 32
      %1966 = vsyncadd [#allocation6], %s1965
      %s1968 = sshll.u32 [#allocation17], 4
      %s1969 = int_to_ptr.vmem [resolvable:$true] %s1968
      %1971 = dma.vmem_to_hbm [thread:$0]  %s1969, 32, %s8, [#allocation6]
    $region65: #{resdensenet_forward.1} parent=1 // pred_fallthru
      _
    // Predicated region
    $region66: #{resdensenet_forward.1} parent=1 // pred_check
      _
    $region67: #{resdensenet_forward.1} parent=1 // pred_check_branch
      %1973 = sbr.rel (0) target = $region69
    $region68: #{resdensenet_forward.1} parent=1 // pred_region
      %1974 = dma.done [#allocation6], 32
    $region69: #{resdensenet_forward.1} parent=1 // pred_fallthru
      _
    %1975 = vsyncpa [#allocation5], 1
    %1976 = vsyncpa [#allocation9], 1
    %1977 = vsyncpa [#allocation12], 1
    %1978 = vsyncpa [#allocation16], 1
    %1979 = vsyncpa [#allocation6], 1
    %1980 = vsyncpa [#allocation7], 1

</llo_original>
